<compile_context>
chip_gen: v7x
topology: tpu7x:2x2x1
jax: 0.10.0
libtpu: 0.0.40
codegen_flags: <defaults>
</compile_context>

<pallas_src>
import math

import jax
import jax.numpy as jnp
from jax import lax
from jax.experimental import pallas as pl
from jax.experimental.pallas import tpu as pltpu


def _round_up(a, b):
    return (a + b - 1) // b * b


def _choose_h_chunk(H, target=512):
    """Largest lane-aligned (multiple-of-128) chunk of H, <= target, that divides H."""
    if H <= target:
        return H
    for cand in (512, 384, 256, 128):
        if cand <= target and H % cand == 0:
            return cand
    return H  # no aligned divisor; fall back to a single pass over H


def _make_ffn_kernel(h_chunk, n_chunks):
    inv_sqrt2 = 1.0 / math.sqrt(2.0)

    def ffn_chunk(x_ref, w1_ref, b1_ref, w2_ref, off):
        # First linear (one H-chunk): native-dtype operands on the MXU, f32 accumulate.
        h = jnp.dot(x_ref[...], w1_ref[:, pl.ds(off, h_chunk)],
                    preferred_element_type=jnp.float32)
        h = h + b1_ref[:, pl.ds(off, h_chunk)]            # bias kept in f32
        # Dropout(p=0.0) is the identity in the forward pass.
        # Exact erf GELU (PyTorch nn.GELU default) in f32 on the VPU/EUP.
        # TODO(synk): tanh-approx / bf16 GELU is faster on v6e/v7x but numerics-changing.
        g = 0.5 * h * (1.0 + lax.erf(h * inv_sqrt2))
        # Second linear (same H-chunk): cast activation to the weight dtype for the MXU.
        return jnp.dot(g.astype(w2_ref.dtype), w2_ref[pl.ds(off, h_chunk), :],
                       preferred_element_type=jnp.float32)

    def kernel(x_ref, w1_ref, b1_ref, w2_ref, b2_ref, o_ref, acc_ref):
        if n_chunks == 1:
            # Fast path: single chunk, no accumulator round-trip.
            y = ffn_chunk(x_ref, w1_ref, b1_ref, w2_ref, 0)
            o_ref[...] = (y + b2_ref[...]).astype(o_ref.dtype)
        else:
            acc_ref[...] = jnp.zeros_like(acc_ref)

            def body(c, carry):
                off = pl.multiple_of(c * h_chunk, h_chunk)
                acc_ref[...] += ffn_chunk(x_ref, w1_ref, b1_ref, w2_ref, off)
                return carry

            lax.fori_loop(0, n_chunks, body, 0, unroll=True)
            o_ref[...] = (acc_ref[...] + b2_ref[...]).astype(o_ref.dtype)

    return kernel


def _vmem_ceiling_bytes():
    try:
        kind = jax.devices()[0].device_kind.lower()
    except Exception:
        kind = ""
    # 128-MiB-VMEM parts (v4/v5e/v6e) tolerate a much higher scoped limit than the
    # 64-MiB v7x part; stay conservative for unknown chips.
    if any(t in kind for t in ("v4", "v5", "v6")):
        return 96 * 1024 * 1024
    return 56 * 1024 * 1024


def feed_forward_pallas(x, w1, b1, w2, b2, *, block_rows=512, h_chunk=None,
                        vmem_limit_bytes=None):
    """x: [B, S, D]; w1: [D, 4D]; b1: [4D]; w2: [4D, D]; b2: [D].

    Weights are stored transposed vs. PyTorch so the kernel does row-major x @ w.
    x / w1 / w2 may be f32 or bf16 (bf16 -> native MXU rate, half the weight HBM
    traffic); biases, matmul accumulation and the GELU math stay in f32.
    block_rows: token-tile target; prefer multiples of 256 (full MXU passes on v6e/v7x).
    """
    B, S, D = x.shape
    H = w1.shape[1]
    N = B * S

    x_isz = jnp.dtype(x.dtype).itemsize
    w_isz = jnp.dtype(w1.dtype).itemsize

    # Token-tile size: multiple of the sublane packing (8 f32 / 16 bf16), clamped to the
    # problem size. Ragged last tiles are handled by masked edge-block reads / clipped
    # writes, so no host-side padding or output slicing is needed.
    sub = 8 * max(1, 4 // x_isz)
    tm = max(sub, min(_round_up(int(block_rows), sub), _round_up(N, sub)))
    # v7x has 2 TensorCores sharing the "parallel" grid axis: if a single tile would
    # cover every token, split it so both cores get work.
    if pl.cdiv(N, tm) < 2 and N >= 2 * sub:
        tm = _round_up(pl.cdiv(N, 2), sub)
    grid = (pl.cdiv(N, tm),)

    if h_chunk is None:
        h_chunk = _choose_h_chunk(H)
    assert H % h_chunk == 0, "h_chunk must divide the hidden dim"
    n_chunks = H // h_chunk

    kernel = _make_ffn_kernel(h_chunk, n_chunks)

    x2 = x.reshape(N, D)                              # contiguous -> free reshape
    b1_2 = b1.reshape(1, H).astype(jnp.float32)
    b2_2 = b2.reshape(1, D).astype(jnp.float32)

    cost = pl.CostEstimate(
        flops=4 * N * D * H,                          # two (N,D)x(D,H)-sized matmuls
        transcendentals=N * H,                        # one erf per hidden activation
        bytes_accessed=(2 * N * D * x_isz             # x in + y out
                        + 2 * D * H * w_isz           # w1 + w2
                        + 4 * (H + D)),               # biases (f32)
    )

    def run(weight_buffering):
        w_mode = pl.Buffered(1) if weight_buffering else None
        w_bufs = 1 if weight_buffering else 2

        # VMEM accounting: resident weights + double-buffered token tiles + f32
        # accumulator scratch + live (TM, h_chunk) f32 chunk intermediates (h, g).
        need = (w_bufs * (2 * D * H * w_isz + 4 * (H + D))
                + 2 * 2 * tm * D * x_isz
                + tm * D * 4
                + 2 * tm * h_chunk * 4)
        limit = vmem_limit_bytes
        if limit is None and need * 5 // 4 > 16 * 1024 * 1024:
            limit = min(_vmem_ceiling_bytes(), max(32 * 1024 * 1024, need * 5 // 4))

        return pl.pallas_call(
            kernel,
            out_shape=jax.ShapeDtypeStruct((N, D), x.dtype),
            grid_spec=pltpu.PrefetchScalarGridSpec(
                num_scalar_prefetch=0,
                grid=grid,
                in_specs=[
                    pl.BlockSpec((tm, D), lambda i: (i, 0)),                        # x: streams
                    pl.BlockSpec((D, H), lambda i: (0, 0), pipeline_mode=w_mode),   # w1: resident
                    pl.BlockSpec((1, H), lambda i: (0, 0), pipeline_mode=w_mode),   # b1: resident
                    pl.BlockSpec((H, D), lambda i: (0, 0), pipeline_mode=w_mode),   # w2: resident
                    pl.BlockSpec((1, D), lambda i: (0, 0), pipeline_mode=w_mode),   # b2: resident
                ],
                out_specs=pl.BlockSpec((tm, D), lambda i: (i, 0)),
                scratch_shapes=[pltpu.VMEM((tm, D), jnp.float32)],
            ),
            compiler_params=pltpu.CompilerParams(
                dimension_semantics=("parallel",),     # token tiles are independent
                vmem_limit_bytes=limit,
            ),
            cost_estimate=cost,
        )(x2, w1, b1_2, w2, b2_2)

    try:
        out = run(weight_buffering=True)               # single-buffered resident weights
    except Exception:
        # Fallback for jax builds that reject pl.Buffered(1) on pallas_call BlockSpecs.
        out = run(weight_buffering=False)

    return out.reshape(B, S, D)


def feed_forward_ref(x, w1, b1, w2, b2):
    """Pure-JAX reference (f32 math, mirroring the kernel's rounding of the
    second-matmul activation to the weight dtype)."""
    xf = x.astype(jnp.float32)
    w1f = w1.astype(jnp.float32)
    w2f = w2.astype(jnp.float32)
    h = jnp.einsum("bsd,dh->bsh", xf, w1f) + b1.astype(jnp.float32)
    g = 0.5 * h * (1.0 + lax.erf(h / jnp.sqrt(2.0)))
    g = g.astype(w2.dtype).astype(jnp.float32)
    return jnp.einsum("bsh,hd->bsd", g, w2f) + b2.astype(jnp.float32)


if __name__ == "__main__":
    # Small baby-BERT-ish shapes; S=9 makes N=18 so ragged (masked) edge tiles are hit.
    B, S, D = 2, 9, 64
    H = 4 * D

    key = jax.random.PRNGKey(0)
    kx, k1, k2, k3, k4 = jax.random.split(key, 5)

    # Deterministic parameter init (uniform, like nn.Linear's default scale).
    bound1 = 1.0 / math.sqrt(D)
    bound2 = 1.0 / math.sqrt(H)
    w1 = jax.random.uniform(k1, (D, H), jnp.float32, -bound1, bound1)
    b1 = jax.random.uniform(k2, (H,), jnp.float32, -bound1, bound1)
    w2 = jax.random.uniform(k3, (H, D), jnp.float32, -bound2, bound2)
    b2 = jax.random.uniform(k4, (D,), jnp.float32, -bound2, bound2)

    x = jax.random.normal(kx, (B, S, D), jnp.float32)

    # ---- f32 path: multi-tile ragged grid (N=18, tm=8 -> 3 tiles, last one masked)
    # and the 2-chunk H loop (h_chunk=128 -> fori_loop accumulation into VMEM scratch).
    y = feed_forward_pallas(x, w1, b1, w2, b2, block_rows=8, h_chunk=128)
    y = jax.block_until_ready(y)
    y_ref = feed_forward_ref(x, w1, b1, w2, b2)
    assert y.shape == (B, S, D)
    assert jnp.allclose(y, y_ref, atol=2e-5, rtol=2e-5)

    # ---- bf16 weights/activations: native MXU dtype, f32 accumulation / GELU,
    # single-chunk fast path, single ragged token tile, Buffered(1) resident weights.
    xb = x.astype(jnp.bfloat16)
    w1b = w1.astype(jnp.bfloat16)
    w2b = w2.astype(jnp.bfloat16)
    yb = feed_forward_pallas(xb, w1b, b1, w2b, b2, block_rows=64)
    yb = jax.block_until_ready(yb)
    yb_ref = feed_forward_ref(xb, w1b, b1, w2b, b2)
    assert yb.dtype == jnp.bfloat16
    assert jnp.allclose(yb.astype(jnp.float32), yb_ref, atol=2e-2, rtol=2e-2)

    print("KERNEL_OK")
</pallas_src>

<mosaic_0001>
module attributes {stable_mosaic.version = 11 : i64} {
  func.func @kernel(%arg0: i32, %arg1: memref<8x64xf32, #tpu.memory_space<vmem>>, %arg2: memref<64x256xf32, #tpu.memory_space<vmem>>, %arg3: memref<1x256xf32, #tpu.memory_space<vmem>>, %arg4: memref<256x64xf32, #tpu.memory_space<vmem>>, %arg5: memref<1x64xf32, #tpu.memory_space<vmem>>, %arg6: memref<8x64xf32, #tpu.memory_space<vmem>>, %arg7: memref<8x64xf32, #tpu.memory_space<vmem>>) attributes {dimension_semantics = [#tpu.dimension_semantics<parallel>], iteration_bounds = array<i64: 3>, scalar_prefetch = 0 : i64, scratch_operands = 1 : i64, tpu.core_type = #tpu.core_type<tc>, window_params = [{transform_indices = @transform_0, window_bounds = array<i64: 8, 64>}, {pipeline_mode = #tpu.pipeline_mode<synchronous>, transform_indices = @transform_1, window_bounds = array<i64: 64, 256>}, {pipeline_mode = #tpu.pipeline_mode<synchronous>, transform_indices = @transform_2, window_bounds = array<i64: 1, 256>}, {pipeline_mode = #tpu.pipeline_mode<synchronous>, transform_indices = @transform_3, window_bounds = array<i64: 256, 64>}, {pipeline_mode = #tpu.pipeline_mode<synchronous>, transform_indices = @transform_4, window_bounds = array<i64: 1, 64>}, {transform_indices = @transform_5, window_bounds = array<i64: 8, 64>}]} {
    %cst = arith.constant 0.000000e+00 : f32
    %0 = vector.broadcast %cst : f32 to vector<8x64xf32>
    %c0 = arith.constant 0 : index
    %c0_0 = arith.constant 0 : index
    %1 = vector.load %arg7[%c0, %c0_0] : memref<8x64xf32, #tpu.memory_space<vmem>>, vector<8x64xf32>
    tpu.vector_store %arg7[%c0, %c0_0], %0 {strides = array<i32>} : memref<8x64xf32, #tpu.memory_space<vmem>>, vector<8x64xf32>,
    %c0_i32 = arith.constant 0 : i32
    %c128_i32 = arith.constant 128 : i32
    %2 = arith.muli %c0_i32, %c128_i32 : i32
    %3 = tpu.assume_multiple %2, 128 : i32
    %c0_1 = arith.constant 0 : index
    %c0_2 = arith.constant 0 : index
    %4 = vector.load %arg7[%c0_1, %c0_2] : memref<8x64xf32, #tpu.memory_space<vmem>>, vector<8x64xf32>
    %c0_3 = arith.constant 0 : index
    %c0_4 = arith.constant 0 : index
    %5 = vector.load %arg1[%c0_3, %c0_4] : memref<8x64xf32, #tpu.memory_space<vmem>>, vector<8x64xf32>
    %c0_5 = arith.constant 0 : index
    %6 = arith.index_cast %3 : i32 to index
    %7 = vector.load %arg2[%c0_5, %6] : memref<64x256xf32, #tpu.memory_space<vmem>>, vector<64x128xf32>
    %cst_6 = arith.constant dense<0.000000e+00> : vector<8x128xf32>
    %8 = tpu.matmul %5, %7, %cst_6 {dimension_numbers = #tpu.dot_dimension_numbers<[1], [0], [0], [1], [0, 0, 1, 1], [], []>} : vector<8x64xf32>, vector<64x128xf32>, vector<8x128xf32> -> vector<8x128xf32>
    %c0_7 = arith.constant 0 : index
    %9 = arith.index_cast %3 : i32 to index
    %10 = vector.load %arg3[%c0_7, %9] : memref<1x256xf32, #tpu.memory_space<vmem>>, vector<1x128xf32>
    %11 = vector.broadcast %10 : vector<1x128xf32> to vector<8x128xf32>
    %12 = arith.addf %8, %11 : vector<8x128xf32>
    %cst_8 = arith.constant 5.000000e-01 : f32
    %13 = vector.broadcast %cst_8 : f32 to vector<8x128xf32>
    %14 = arith.mulf %13, %12 : vector<8x128xf32>
    %cst_9 = arith.constant 0.707106769 : f32
    %15 = vector.broadcast %cst_9 : f32 to vector<8x128xf32>
    %16 = arith.mulf %12, %15 : vector<8x128xf32>
    %17 = math.erf %16 : vector<8x128xf32>
    %cst_10 = arith.constant 1.000000e+00 : f32
    %18 = vector.broadcast %cst_10 : f32 to vector<8x128xf32>
    %19 = arith.addf %18, %17 : vector<8x128xf32>
    %20 = arith.mulf %14, %19 : vector<8x128xf32>
    %21 = arith.index_cast %3 : i32 to index
    %c0_11 = arith.constant 0 : index
    %22 = vector.load %arg4[%21, %c0_11] : memref<256x64xf32, #tpu.memory_space<vmem>>, vector<128x64xf32>
    %cst_12 = arith.constant dense<0.000000e+00> : vector<8x64xf32>
    %23 = tpu.matmul %20, %22, %cst_12 {dimension_numbers = #tpu.dot_dimension_numbers<[1], [0], [0], [1], [0, 0, 1, 1], [], []>} : vector<8x128xf32>, vector<128x64xf32>, vector<8x64xf32> -> vector<8x64xf32>
    %24 = arith.addf %4, %23 : vector<8x64xf32>
    %c0_13 = arith.constant 0 : index
    %c0_14 = arith.constant 0 : index
    %25 = vector.load %arg7[%c0_13, %c0_14] : memref<8x64xf32, #tpu.memory_space<vmem>>, vector<8x64xf32>
    tpu.vector_store %arg7[%c0_13, %c0_14], %24 {strides = array<i32>} : memref<8x64xf32, #tpu.memory_space<vmem>>, vector<8x64xf32>,
    %c1_i32 = arith.constant 1 : i32
    %c128_i32_15 = arith.constant 128 : i32
    %26 = arith.muli %c1_i32, %c128_i32_15 : i32
    %27 = tpu.assume_multiple %26, 128 : i32
    %c0_16 = arith.constant 0 : index
    %c0_17 = arith.constant 0 : index
    %28 = vector.load %arg7[%c0_16, %c0_17] : memref<8x64xf32, #tpu.memory_space<vmem>>, vector<8x64xf32>
    %c0_18 = arith.constant 0 : index
    %c0_19 = arith.constant 0 : index
    %29 = vector.load %arg1[%c0_18, %c0_19] : memref<8x64xf32, #tpu.memory_space<vmem>>, vector<8x64xf32>
    %c0_20 = arith.constant 0 : index
    %30 = arith.index_cast %27 : i32 to index
    %31 = vector.load %arg2[%c0_20, %30] : memref<64x256xf32, #tpu.memory_space<vmem>>, vector<64x128xf32>
    %cst_21 = arith.constant dense<0.000000e+00> : vector<8x128xf32>
    %32 = tpu.matmul %29, %31, %cst_21 {dimension_numbers = #tpu.dot_dimension_numbers<[1], [0], [0], [1], [0, 0, 1, 1], [], []>} : vector<8x64xf32>, vector<64x128xf32>, vector<8x128xf32> -> vector<8x128xf32>
    %c0_22 = arith.constant 0 : index
    %33 = arith.index_cast %27 : i32 to index
    %34 = vector.load %arg3[%c0_22, %33] : memref<1x256xf32, #tpu.memory_space<vmem>>, vector<1x128xf32>
    %35 = vector.broadcast %34 : vector<1x128xf32> to vector<8x128xf32>
    %36 = arith.addf %32, %35 : vector<8x128xf32>
    %cst_23 = arith.constant 5.000000e-01 : f32
    %37 = vector.broadcast %cst_23 : f32 to vector<8x128xf32>
    %38 = arith.mulf %37, %36 : vector<8x128xf32>
    %cst_24 = arith.constant 0.707106769 : f32
    %39 = vector.broadcast %cst_24 : f32 to vector<8x128xf32>
    %40 = arith.mulf %36, %39 : vector<8x128xf32>
    %41 = math.erf %40 : vector<8x128xf32>
    %cst_25 = arith.constant 1.000000e+00 : f32
    %42 = vector.broadcast %cst_25 : f32 to vector<8x128xf32>
    %43 = arith.addf %42, %41 : vector<8x128xf32>
    %44 = arith.mulf %38, %43 : vector<8x128xf32>
    %45 = arith.index_cast %27 : i32 to index
    %c0_26 = arith.constant 0 : index
    %46 = vector.load %arg4[%45, %c0_26] : memref<256x64xf32, #tpu.memory_space<vmem>>, vector<128x64xf32>
    %cst_27 = arith.constant dense<0.000000e+00> : vector<8x64xf32>
    %47 = tpu.matmul %44, %46, %cst_27 {dimension_numbers = #tpu.dot_dimension_numbers<[1], [0], [0], [1], [0, 0, 1, 1], [], []>} : vector<8x128xf32>, vector<128x64xf32>, vector<8x64xf32> -> vector<8x64xf32>
    %48 = arith.addf %28, %47 : vector<8x64xf32>
    %c0_28 = arith.constant 0 : index
    %c0_29 = arith.constant 0 : index
    %49 = vector.load %arg7[%c0_28, %c0_29] : memref<8x64xf32, #tpu.memory_space<vmem>>, vector<8x64xf32>
    tpu.vector_store %arg7[%c0_28, %c0_29], %48 {strides = array<i32>} : memref<8x64xf32, #tpu.memory_space<vmem>>, vector<8x64xf32>,
    %c2_i32 = arith.constant 2 : i32
    %c0_30 = arith.constant 0 : index
    %c0_31 = arith.constant 0 : index
    %50 = vector.load %arg7[%c0_30, %c0_31] : memref<8x64xf32, #tpu.memory_space<vmem>>, vector<8x64xf32>
    %c0_32 = arith.constant 0 : index
    %c0_33 = arith.constant 0 : index
    %51 = vector.load %arg5[%c0_32, %c0_33] : memref<1x64xf32, #tpu.memory_space<vmem>>, vector<1x64xf32>
    %52 = vector.broadcast %51 : vector<1x64xf32> to vector<8x64xf32>
    %53 = arith.addf %50, %52 : vector<8x64xf32>
    %c0_34 = arith.constant 0 : index
    %c0_35 = arith.constant 0 : index
    %54 = vector.load %arg6[%c0_34, %c0_35] : memref<8x64xf32, #tpu.memory_space<vmem>>, vector<8x64xf32>
    tpu.vector_store %arg6[%c0_34, %c0_35], %53 {strides = array<i32>} : memref<8x64xf32, #tpu.memory_space<vmem>>, vector<8x64xf32>,
    return
  }
  func.func @transform_0(%arg0: i32) -> (i32, i32) {
    %c0_i32 = arith.constant 0 : i32
    %c0_i32_0 = arith.constant 0 : i32
    return %arg0, %c0_i32 : i32, i32
  }
  func.func @transform_1(%arg0: i32) -> (i32, i32) {
    %c0_i32 = arith.constant 0 : i32
    %c0_i32_0 = arith.constant 0 : i32
    %c0_i32_1 = arith.constant 0 : i32
    return %c0_i32, %c0_i32_0 : i32, i32
  }
  func.func @transform_2(%arg0: i32) -> (i32, i32) {
    %c0_i32 = arith.constant 0 : i32
    %c0_i32_0 = arith.constant 0 : i32
    %c0_i32_1 = arith.constant 0 : i32
    return %c0_i32, %c0_i32_0 : i32, i32
  }
  func.func @transform_3(%arg0: i32) -> (i32, i32) {
    %c0_i32 = arith.constant 0 : i32
    %c0_i32_0 = arith.constant 0 : i32
    %c0_i32_1 = arith.constant 0 : i32
    return %c0_i32, %c0_i32_0 : i32, i32
  }
  func.func @transform_4(%arg0: i32) -> (i32, i32) {
    %c0_i32 = arith.constant 0 : i32
    %c0_i32_0 = arith.constant 0 : i32
    %c0_i32_1 = arith.constant 0 : i32
    return %c0_i32, %c0_i32_0 : i32, i32
  }
  func.func @transform_5(%arg0: i32) -> (i32, i32) {
    %c0_i32 = arith.constant 0 : i32
    %c0_i32_0 = arith.constant 0 : i32
    return %arg0, %c0_i32 : i32, i32
  }
}

module attributes {stable_mosaic.version = 11 : i64} {
  func.func @kernel(%arg0: i32, %arg1: memref<8x64xf32, #tpu.memory_space<vmem>>, %arg2: memref<64x256xf32, #tpu.memory_space<vmem>>, %arg3: memref<1x256xf32, #tpu.memory_space<vmem>>, %arg4: memref<256x64xf32, #tpu.memory_space<vmem>>, %arg5: memref<1x64xf32, #tpu.memory_space<vmem>>, %arg6: memref<8x64xf32, #tpu.memory_space<vmem>>, %arg7: memref<8x64xf32, #tpu.memory_space<vmem>>) attributes {dimension_semantics = [#tpu.dimension_semantics<parallel>], iteration_bounds = array<i64: 3>, scalar_prefetch = 0 : i64, scratch_operands = 1 : i64, tpu.core_type = #tpu.core_type<tc>, window_params = [{transform_indices = @transform_0, window_bounds = array<i64: 8, 64>}, {pipeline_mode = #tpu.pipeline_mode<synchronous>, transform_indices = @transform_1, window_bounds = array<i64: 64, 256>}, {pipeline_mode = #tpu.pipeline_mode<synchronous>, transform_indices = @transform_2, window_bounds = array<i64: 1, 256>}, {pipeline_mode = #tpu.pipeline_mode<synchronous>, transform_indices = @transform_3, window_bounds = array<i64: 256, 64>}, {pipeline_mode = #tpu.pipeline_mode<synchronous>, transform_indices = @transform_4, window_bounds = array<i64: 1, 64>}, {transform_indices = @transform_5, window_bounds = array<i64: 8, 64>}]} {
    %cst = arith.constant 0.000000e+00 : f32
    %0 = vector.broadcast %cst : f32 to vector<8x64xf32>
    %c0 = arith.constant 0 : index
    %c0_0 = arith.constant 0 : index
    %1 = vector.load %arg7[%c0, %c0_0] : memref<8x64xf32, #tpu.memory_space<vmem>>, vector<8x64xf32>
    tpu.vector_store %arg7[%c0, %c0_0], %0 {strides = array<i32>} : memref<8x64xf32, #tpu.memory_space<vmem>>, vector<8x64xf32>,
    %c0_i32 = arith.constant 0 : i32
    %c128_i32 = arith.constant 128 : i32
    %2 = arith.muli %c0_i32, %c128_i32 : i32
    %3 = tpu.assume_multiple %2, 128 : i32
    %c0_1 = arith.constant 0 : index
    %c0_2 = arith.constant 0 : index
    %4 = vector.load %arg7[%c0_1, %c0_2] : memref<8x64xf32, #tpu.memory_space<vmem>>, vector<8x64xf32>
    %c0_3 = arith.constant 0 : index
    %c0_4 = arith.constant 0 : index
    %5 = vector.load %arg1[%c0_3, %c0_4] : memref<8x64xf32, #tpu.memory_space<vmem>>, vector<8x64xf32>
    %c0_5 = arith.constant 0 : index
    %6 = arith.index_cast %3 : i32 to index
    %7 = vector.load %arg2[%c0_5, %6] : memref<64x256xf32, #tpu.memory_space<vmem>>, vector<64x128xf32>
    %cst_6 = arith.constant dense<0.000000e+00> : vector<8x128xf32>
    %8 = tpu.matmul %5, %7, %cst_6 {dimension_numbers = #tpu.dot_dimension_numbers<[1], [0], [0], [1], [0, 0, 1, 1], [], []>} : vector<8x64xf32>, vector<64x128xf32>, vector<8x128xf32> -> vector<8x128xf32>
    %c0_7 = arith.constant 0 : index
    %9 = arith.index_cast %3 : i32 to index
    %10 = vector.load %arg3[%c0_7, %9] : memref<1x256xf32, #tpu.memory_space<vmem>>, vector<1x128xf32>
    %11 = vector.broadcast %10 : vector<1x128xf32> to vector<8x128xf32>
    %12 = arith.addf %8, %11 : vector<8x128xf32>
    %cst_8 = arith.constant 5.000000e-01 : f32
    %13 = vector.broadcast %cst_8 : f32 to vector<8x128xf32>
    %14 = arith.mulf %13, %12 : vector<8x128xf32>
    %cst_9 = arith.constant 0.707106769 : f32
    %15 = vector.broadcast %cst_9 : f32 to vector<8x128xf32>
    %16 = arith.mulf %12, %15 : vector<8x128xf32>
    %17 = math.erf %16 : vector<8x128xf32>
    %cst_10 = arith.constant 1.000000e+00 : f32
    %18 = vector.broadcast %cst_10 : f32 to vector<8x128xf32>
    %19 = arith.addf %18, %17 : vector<8x128xf32>
    %20 = arith.mulf %14, %19 : vector<8x128xf32>
    %21 = arith.index_cast %3 : i32 to index
    %c0_11 = arith.constant 0 : index
    %22 = vector.load %arg4[%21, %c0_11] : memref<256x64xf32, #tpu.memory_space<vmem>>, vector<128x64xf32>
    %cst_12 = arith.constant dense<0.000000e+00> : vector<8x64xf32>
    %23 = tpu.matmul %20, %22, %cst_12 {dimension_numbers = #tpu.dot_dimension_numbers<[1], [0], [0], [1], [0, 0, 1, 1], [], []>} : vector<8x128xf32>, vector<128x64xf32>, vector<8x64xf32> -> vector<8x64xf32>
    %24 = arith.addf %4, %23 : vector<8x64xf32>
    %c0_13 = arith.constant 0 : index
    %c0_14 = arith.constant 0 : index
    %25 = vector.load %arg7[%c0_13, %c0_14] : memref<8x64xf32, #tpu.memory_space<vmem>>, vector<8x64xf32>
    tpu.vector_store %arg7[%c0_13, %c0_14], %24 {strides = array<i32>} : memref<8x64xf32, #tpu.memory_space<vmem>>, vector<8x64xf32>,
    %c1_i32 = arith.constant 1 : i32
    %c128_i32_15 = arith.constant 128 : i32
    %26 = arith.muli %c1_i32, %c128_i32_15 : i32
    %27 = tpu.assume_multiple %26, 128 : i32
    %c0_16 = arith.constant 0 : index
    %c0_17 = arith.constant 0 : index
    %28 = vector.load %arg7[%c0_16, %c0_17] : memref<8x64xf32, #tpu.memory_space<vmem>>, vector<8x64xf32>
    %c0_18 = arith.constant 0 : index
    %c0_19 = arith.constant 0 : index
    %29 = vector.load %arg1[%c0_18, %c0_19] : memref<8x64xf32, #tpu.memory_space<vmem>>, vector<8x64xf32>
    %c0_20 = arith.constant 0 : index
    %30 = arith.index_cast %27 : i32 to index
    %31 = vector.load %arg2[%c0_20, %30] : memref<64x256xf32, #tpu.memory_space<vmem>>, vector<64x128xf32>
    %cst_21 = arith.constant dense<0.000000e+00> : vector<8x128xf32>
    %32 = tpu.matmul %29, %31, %cst_21 {dimension_numbers = #tpu.dot_dimension_numbers<[1], [0], [0], [1], [0, 0, 1, 1], [], []>} : vector<8x64xf32>, vector<64x128xf32>, vector<8x128xf32> -> vector<8x128xf32>
    %c0_22 = arith.constant 0 : index
    %33 = arith.index_cast %27 : i32 to index
    %34 = vector.load %arg3[%c0_22, %33] : memref<1x256xf32, #tpu.memory_space<vmem>>, vector<1x128xf32>
    %35 = vector.broadcast %34 : vector<1x128xf32> to vector<8x128xf32>
    %36 = arith.addf %32, %35 : vector<8x128xf32>
    %cst_23 = arith.constant 5.000000e-01 : f32
    %37 = vector.broadcast %cst_23 : f32 to vector<8x128xf32>
    %38 = arith.mulf %37, %36 : vector<8x128xf32>
    %cst_24 = arith.constant 0.707106769 : f32
    %39 = vector.broadcast %cst_24 : f32 to vector<8x128xf32>
    %40 = arith.mulf %36, %39 : vector<8x128xf32>
    %41 = math.erf %40 : vector<8x128xf32>
    %cst_25 = arith.constant 1.000000e+00 : f32
    %42 = vector.broadcast %cst_25 : f32 to vector<8x128xf32>
    %43 = arith.addf %42, %41 : vector<8x128xf32>
    %44 = arith.mulf %38, %43 : vector<8x128xf32>
    %45 = arith.index_cast %27 : i32 to index
    %c0_26 = arith.constant 0 : index
    %46 = vector.load %arg4[%45, %c0_26] : memref<256x64xf32, #tpu.memory_space<vmem>>, vector<128x64xf32>
    %cst_27 = arith.constant dense<0.000000e+00> : vector<8x64xf32>
    %47 = tpu.matmul %44, %46, %cst_27 {dimension_numbers = #tpu.dot_dimension_numbers<[1], [0], [0], [1], [0, 0, 1, 1], [], []>} : vector<8x128xf32>, vector<128x64xf32>, vector<8x64xf32> -> vector<8x64xf32>
    %48 = arith.addf %28, %47 : vector<8x64xf32>
    %c0_28 = arith.constant 0 : index
    %c0_29 = arith.constant 0 : index
    %49 = vector.load %arg7[%c0_28, %c0_29] : memref<8x64xf32, #tpu.memory_space<vmem>>, vector<8x64xf32>
    tpu.vector_store %arg7[%c0_28, %c0_29], %48 {strides = array<i32>} : memref<8x64xf32, #tpu.memory_space<vmem>>, vector<8x64xf32>,
    %c2_i32 = arith.constant 2 : i32
    %c0_30 = arith.constant 0 : index
    %c0_31 = arith.constant 0 : index
    %50 = vector.load %arg7[%c0_30, %c0_31] : memref<8x64xf32, #tpu.memory_space<vmem>>, vector<8x64xf32>
    %c0_32 = arith.constant 0 : index
    %c0_33 = arith.constant 0 : index
    %51 = vector.load %arg5[%c0_32, %c0_33] : memref<1x64xf32, #tpu.memory_space<vmem>>, vector<1x64xf32>
    %52 = vector.broadcast %51 : vector<1x64xf32> to vector<8x64xf32>
    %53 = arith.addf %50, %52 : vector<8x64xf32>
    %c0_34 = arith.constant 0 : index
    %c0_35 = arith.constant 0 : index
    %54 = vector.load %arg6[%c0_34, %c0_35] : memref<8x64xf32, #tpu.memory_space<vmem>>, vector<8x64xf32>
    tpu.vector_store %arg6[%c0_34, %c0_35], %53 {strides = array<i32>} : memref<8x64xf32, #tpu.memory_space<vmem>>, vector<8x64xf32>,
    return
  }
  func.func @transform_0(%arg0: i32) -> (i32, i32) {
    %c0_i32 = arith.constant 0 : i32
    %c0_i32_0 = arith.constant 0 : i32
    return %arg0, %c0_i32 : i32, i32
  }
  func.func @transform_1(%arg0: i32) -> (i32, i32) {
    %c0_i32 = arith.constant 0 : i32
    %c0_i32_0 = arith.constant 0 : i32
    %c0_i32_1 = arith.constant 0 : i32
    return %c0_i32, %c0_i32_0 : i32, i32
  }
  func.func @transform_2(%arg0: i32) -> (i32, i32) {
    %c0_i32 = arith.constant 0 : i32
    %c0_i32_0 = arith.constant 0 : i32
    %c0_i32_1 = arith.constant 0 : i32
    return %c0_i32, %c0_i32_0 : i32, i32
  }
  func.func @transform_3(%arg0: i32) -> (i32, i32) {
    %c0_i32 = arith.constant 0 : i32
    %c0_i32_0 = arith.constant 0 : i32
    %c0_i32_1 = arith.constant 0 : i32
    return %c0_i32, %c0_i32_0 : i32, i32
  }
  func.func @transform_4(%arg0: i32) -> (i32, i32) {
    %c0_i32 = arith.constant 0 : i32
    %c0_i32_0 = arith.constant 0 : i32
    %c0_i32_1 = arith.constant 0 : i32
    return %c0_i32, %c0_i32_0 : i32, i32
  }
  func.func @transform_5(%arg0: i32) -> (i32, i32) {
    %c0_i32 = arith.constant 0 : i32
    %c0_i32_0 = arith.constant 0 : i32
    return %arg0, %c0_i32 : i32, i32
  }
}

</mosaic_0001>

<llo_original>
// kernel: tpu_custom_call.1
$region0: #{tpu_custom_call.1}
  #allocation0 [shape = 'u32[]', space=smem, size = 0x4, offset = 0x4, fixed_abs, tag = 'smem constant byte address 0x4 - core index']
  #allocation1 [shape = 'u32[144,128]{1,0:T(1,128)}', space=vmem, size = 0x12000, scoped, tag = 'internal scratch']
  #allocation2 [shape = 'f32[8,64]{1,0:T(8,128)}', space=vmem, size = 0x1000, scoped, tag = 'scratch operand']
  %s0 = inlined_call_operand.vmem [shape: f32[18,64], index: 0, kind: input, shape index: {}]
  %s1 = inlined_call_operand.vmem [shape: f32[64,256], index: 1, kind: input, shape index: {}]
  %s2 = inlined_call_operand.vmem [shape: f32[1,256], index: 2, kind: input, shape index: {}]
  %s3 = inlined_call_operand.vmem [shape: f32[256,64], index: 3, kind: input, shape index: {}]
  %s4 = inlined_call_operand.vmem [shape: f32[1,64], index: 4, kind: input, shape index: {}]
  %s5 = inlined_call_operand.hbm [shape: f32[18,64], index: 5, kind: output, shape index: {}]
  %s6 = sld [smem:[#allocation0]]
  $region53: #{tpu_custom_call.1} parent=0
    _
  %s8 = ssub.s32 1, %s6
  %s9 = scalar_select 0, %s8, %s6
  $region1: #{tpu_custom_call.1} parent=0
    #allocation3 [shape = 'u8[8192]{0}', space=vmem, size = 0x2000, scoped, tag = 'output window, operand 0']
    #allocation4 [shape = 's32[2]{0}', space=sflag, size = 0x8, scoped, tag = 'scoped memory for tpu_custom_call.1']
    %10 = vsyncpa [#allocation4], 0
    %s11 = scalar_lea.sflag [#allocation4], 1
    %12 = vsyncpa %s11, 0
    loop: start=0, step=1, limit=5
    $region2: #{tpu_custom_call.1} parent=1 // loop_pre_header
      _
    $region3: #{tpu_custom_call.1} parent=1 // loop_header
      %s14 = sphi 0, %s18
      %p15 = scmp.ge.s32.totalorder %s14, 5
      %s24 = sphi 0, %s26
      %s27 = sphi 0, %s24
      %s28 = sphi 0, %s27
      %s44 = sphi 0, %s28
      %s48 = sphi 0, %s48
      %s50 = sphi 0, %s48
      %s51 = sphi 0, %s50
      %s65 = sphi 0, %s51
      %s69 = sphi 0, %s69
      %s71 = sphi 0, %s69
      %s72 = sphi 0, %s71
      %s86 = sphi 0, %s72
      %s90 = sphi 0, %s90
      %s92 = sphi 0, %s90
      %s93 = sphi 0, %s92
      %s107 = sphi 0, %s93
      %s111 = sphi 0, %s111
      %s113 = sphi 0, %s111
      %s114 = sphi 0, %s113
      %s128 = sphi 0, %s114
      %s134 = sphi 0, %s136
      %s137 = sphi 0, %s134
      %s138 = sphi 0, %s137
      %s154 = sphi 0, %s138
    $region4: #{tpu_custom_call.1} parent=1 // loop_header_branch
      %17 = sbr.rel (%p15) target = $region8
    $region5: #{tpu_custom_call.1} parent=1 // loop_body
      %s19 = ssub.s32 %s14, 1
      %s20 = ssub.s32 %s14, 2
      %s21 = sadd.s32 %s14, 1
      %s22 = ssub.s32 %s14, %s21
      %p23 = scmp.eq.s32.totalorder %s22, 0
      %s25 = sadd.s32 %s24, 1
      %s26 = scalar_select %p23, %s24, %s25
      %p29 = pneg %p23
      %p30 = scmp.eq.s32.totalorder %s14, 2
      %p31 = por %p29, %p30
      %p32 = scmp.ne.s32.totalorder %s24, %s27
      %p33 = scmp.eq.s32.totalorder %s14, 0
      %p34 = por %p32, %p33
      %p35 = scmp.ne.s32.totalorder %s24, %s27
      %p36 = scmp.eq.s32.totalorder %s19, 2
      %p37 = por %p35, %p36
      %p38 = scmp.ne.s32.totalorder %s27, %s28
      %p39 = scmp.eq.s32.totalorder %s19, 0
      %p40 = por %p38, %p39
      %p41 = scmp.ne.s32.totalorder %s27, %s28
      %p42 = scmp.eq.s32.totalorder %s20, 2
      %p43 = por %p41, %p42
      %p45 = scmp.ne.s32.totalorder %s28, %s44
      %p46 = scmp.eq.s32.totalorder %s20, 0
      %p47 = por %p45, %p46
      %s49 = sadd.s32 %s48, 1
      %p52 = scmp.eq.s32.totalorder %s14, 2
      %p53 = scmp.ne.s32.totalorder %s48, %s50
      %p54 = scmp.eq.s32.totalorder %s14, 0
      %p55 = por %p53, %p54
      %p56 = scmp.ne.s32.totalorder %s48, %s50
      %p57 = scmp.eq.s32.totalorder %s19, 2
      %p58 = por %p56, %p57
      %p59 = scmp.ne.s32.totalorder %s50, %s51
      %p60 = scmp.eq.s32.totalorder %s19, 0
      %p61 = por %p59, %p60
      %p62 = scmp.ne.s32.totalorder %s50, %s51
      %p63 = scmp.eq.s32.totalorder %s20, 2
      %p64 = por %p62, %p63
      %p66 = scmp.ne.s32.totalorder %s51, %s65
      %p67 = scmp.eq.s32.totalorder %s20, 0
      %p68 = por %p66, %p67
      %s70 = sadd.s32 %s69, 1
      %p73 = scmp.eq.s32.totalorder %s14, 2
      %p74 = scmp.ne.s32.totalorder %s69, %s71
      %p75 = scmp.eq.s32.totalorder %s14, 0
      %p76 = por %p74, %p75
      %p77 = scmp.ne.s32.totalorder %s69, %s71
      %p78 = scmp.eq.s32.totalorder %s19, 2
      %p79 = por %p77, %p78
      %p80 = scmp.ne.s32.totalorder %s71, %s72
      %p81 = scmp.eq.s32.totalorder %s19, 0
      %p82 = por %p80, %p81
      %p83 = scmp.ne.s32.totalorder %s71, %s72
      %p84 = scmp.eq.s32.totalorder %s20, 2
      %p85 = por %p83, %p84
      %p87 = scmp.ne.s32.totalorder %s72, %s86
      %p88 = scmp.eq.s32.totalorder %s20, 0
      %p89 = por %p87, %p88
      %s91 = sadd.s32 %s90, 1
      %p94 = scmp.eq.s32.totalorder %s14, 2
      %p95 = scmp.ne.s32.totalorder %s90, %s92
      %p96 = scmp.eq.s32.totalorder %s14, 0
      %p97 = por %p95, %p96
      %p98 = scmp.ne.s32.totalorder %s90, %s92
      %p99 = scmp.eq.s32.totalorder %s19, 2
      %p100 = por %p98, %p99
      %p101 = scmp.ne.s32.totalorder %s92, %s93
      %p102 = scmp.eq.s32.totalorder %s19, 0
      %p103 = por %p101, %p102
      %p104 = scmp.ne.s32.totalorder %s92, %s93
      %p105 = scmp.eq.s32.totalorder %s20, 2
      %p106 = por %p104, %p105
      %p108 = scmp.ne.s32.totalorder %s93, %s107
      %p109 = scmp.eq.s32.totalorder %s20, 0
      %p110 = por %p108, %p109
      %s112 = sadd.s32 %s111, 1
      %p115 = scmp.eq.s32.totalorder %s14, 2
      %p116 = scmp.ne.s32.totalorder %s111, %s113
      %p117 = scmp.eq.s32.totalorder %s14, 0
      %p118 = por %p116, %p117
      %p119 = scmp.ne.s32.totalorder %s111, %s113
      %p120 = scmp.eq.s32.totalorder %s19, 2
      %p121 = por %p119, %p120
      %p122 = scmp.ne.s32.totalorder %s113, %s114
      %p123 = scmp.eq.s32.totalorder %s19, 0
      %p124 = por %p122, %p123
      %p125 = scmp.ne.s32.totalorder %s113, %s114
      %p126 = scmp.eq.s32.totalorder %s20, 2
      %p127 = por %p125, %p126
      %p129 = scmp.ne.s32.totalorder %s114, %s128
      %p130 = scmp.eq.s32.totalorder %s20, 0
      %p131 = por %p129, %p130
      %s132 = ssub.s32 %s14, %s21
      %p133 = scmp.eq.s32.totalorder %s132, 0
      %s135 = sadd.s32 %s134, 1
      %s136 = scalar_select %p133, %s134, %s135
      %p139 = pneg %p133
      %p140 = scmp.eq.s32.totalorder %s14, 2
      %p141 = por %p139, %p140
      %p142 = scmp.ne.s32.totalorder %s134, %s137
      %p143 = scmp.eq.s32.totalorder %s14, 0
      %p144 = por %p142, %p143
      %p145 = scmp.ne.s32.totalorder %s134, %s137
      %p146 = scmp.eq.s32.totalorder %s19, 2
      %p147 = por %p145, %p146
      %p148 = scmp.ne.s32.totalorder %s137, %s138
      %p149 = scmp.eq.s32.totalorder %s19, 0
      %p150 = por %p148, %p149
      %p151 = scmp.ne.s32.totalorder %s137, %s138
      %p152 = scmp.eq.s32.totalorder %s20, 2
      %p153 = por %p151, %p152
      %p155 = scmp.ne.s32.totalorder %s138, %s154
      %p156 = scmp.eq.s32.totalorder %s20, 0
      %p157 = por %p155, %p156
      %p158 = scmp.le.s32.totalorder 1, %s14
      %p159 = scmp.lt.s32.totalorder %s14, 4
      %p160 = pnand %p158, %p159
      %p161 = pneg %p160
      // Predicated region
      $region9: #{tpu_custom_call.1} parent=5 // pred_check
        _
      $region10: #{tpu_custom_call.1} parent=5 // pred_check_branch
        %163 = sbr.rel (%p160) target = $region12
      $region11: #{tpu_custom_call.1} parent=5 // pred_region
        %s164 = ssub.s32 %s14, 1
        // Predicated region
        $region13: #{tpu_custom_call.1} parent=11 // pred_check
          %p165 = pneg %p61
        $region14: #{tpu_custom_call.1} parent=11 // pred_check_branch
          %167 = sbr.rel (%p165) target = $region16
        $region15: #{tpu_custom_call.1} parent=11 // pred_region
          _
        $region16: #{tpu_custom_call.1} parent=11 // pred_fallthru
          _
        // Predicated region
        $region17: #{tpu_custom_call.1} parent=11 // pred_check
          %p168 = pneg %p82
        $region18: #{tpu_custom_call.1} parent=11 // pred_check_branch
          %170 = sbr.rel (%p168) target = $region20
        $region19: #{tpu_custom_call.1} parent=11 // pred_region
          _
        $region20: #{tpu_custom_call.1} parent=11 // pred_fallthru
          _
        // Predicated region
        $region21: #{tpu_custom_call.1} parent=11 // pred_check
          %p171 = pneg %p103
        $region22: #{tpu_custom_call.1} parent=11 // pred_check_branch
          %173 = sbr.rel (%p171) target = $region24
        $region23: #{tpu_custom_call.1} parent=11 // pred_region
          _
        $region24: #{tpu_custom_call.1} parent=11 // pred_fallthru
          _
        // Predicated region
        $region25: #{tpu_custom_call.1} parent=11 // pred_check
          %p174 = pneg %p124
        $region26: #{tpu_custom_call.1} parent=11 // pred_check_branch
          %176 = sbr.rel (%p174) target = $region28
        $region27: #{tpu_custom_call.1} parent=11 // pred_region
          _
        $region28: #{tpu_custom_call.1} parent=11 // pred_fallthru
          _
      $region12: #{tpu_custom_call.1} parent=5 // pred_fallthru
        _
      %p177 = scmp.lt.s32.totalorder %s14, 3
      // Predicated region
      $region29: #{tpu_custom_call.1} parent=5 // pred_check
        %p178 = pneg %p177
      $region30: #{tpu_custom_call.1} parent=5 // pred_check_branch
        %180 = sbr.rel (%p178) target = $region32
      $region31: #{tpu_custom_call.1} parent=5 // pred_region
        // Predicated region
        $region33: #{tpu_custom_call.1} parent=31 // pred_check
          %p181 = pneg %p34
        $region34: #{tpu_custom_call.1} parent=31 // pred_check_branch
          %183 = sbr.rel (%p181) target = $region36
        $region35: #{tpu_custom_call.1} parent=31 // pred_region
          %p184 = scmp.lt.s32.totalorder %s14, 2
          %s185 = scalar_select %p184, %s14, 2
          %s186 = smul.addr %s185, 8
          %s187 = scalar_lea.vmem %s0, %s186
        $region36: #{tpu_custom_call.1} parent=31 // pred_fallthru
          _
      $region32: #{tpu_custom_call.1} parent=5 // pred_fallthru
        _
      %p188 = scmp.le.s32.totalorder 1, %s14
      %p189 = scmp.lt.s32.totalorder %s14, 4
      %p190 = pnand %p188, %p189
      %p191 = pneg %p190
      // Predicated region
      $region37: #{tpu_custom_call.1} parent=5 // pred_check
        _
      $region38: #{tpu_custom_call.1} parent=5 // pred_check_branch
        %193 = sbr.rel (%p190) target = $region40
      $region39: #{tpu_custom_call.1} parent=5 // pred_region
        %s194 = ssub.s32 %s14, 1
        %p195 = scmp.lt.s32.totalorder %s19, 2
        %s196 = scalar_select %p195, %s19, 2
        %s197 = smul.addr %s196, 8
        %s198 = scalar_lea.vmem %s0, %s197
        %p199 = pneg %p40
        %p200 = pneg %p37
        %p201 = pneg %p61
        %p202 = pneg %p58
        %p203 = pneg %p82
        %p204 = pneg %p79
        %p205 = pneg %p103
        %p206 = pneg %p100
        %p207 = pneg %p124
        %p208 = pneg %p121
        %p209 = pneg %p150
        %p210 = pneg %p147
        %s211 = sand.u32 %s137, 1
        %s212 = scalar_lea.sflag [#allocation4], %s211
        %s213 = sand.u32 %s137, 1
        %s214 = smul.addr %s213, 8
        %s215 = scalar_lea.vmem [#allocation3], %s214
        %p216 = scmp.lt.s32.totalorder %s19, 2
        %s217 = scalar_select %p216, %s19, 2
        %s218 = smul.addr %s217, 8
        %s219 = scalar_lea.vmem %s0, %s218
        %vm220 = vcmask 523264
        %221 = vst.msk [vmem:[#allocation2] sm:$0xff] %vm220, 0.0
        %v222 = vld [vmem:[#allocation2] sm:$0xff]
        %v223 = vld [vmem:[%s219] sm:$0xff]
        %v224 = vld [vmem:[%s1] sm:$0xff]
        %v225 = vld [vmem:[%s1 + $0x10] sm:$0xff]
        %v226 = vld [vmem:[%s1 + $0x20] sm:$0xff]
        %v227 = vld [vmem:[%s1 + $0x30] sm:$0xff]
        %v228 = vld [vmem:[%s1 + $0x40] sm:$0xff]
        %v229 = vld [vmem:[%s1 + $0x50] sm:$0xff]
        %v230 = vld [vmem:[%s1 + $0x60] sm:$0xff]
        %v231 = vld [vmem:[%s1 + $0x70] sm:$0xff]
        %v232 = vld [vmem:[%s2] sm:$0x1]
        %v234 = vlaneseq
        %v235 = vshrl.u32 %v234, 7
        %v236 = vsub.s32 0, %v235
        %v237 = vrot.slane %v232, %v236
        %v240 = vsel %vm220, %v223, 0
        %242 = vmatprep.subr.mxu0 0.0
        %243 = vmatpush1.msra.mxu0 %v224
        %244 = vmatprep.subr.mxu0 0.0
        %245 = vmatpush1.msra.mxu0 %v225
        %246 = vmatprep.subr.mxu0 0.0
        %247 = vmatpush1.msra.mxu0 %v226
        %248 = vmatprep.subr.mxu0 0.0
        %249 = vmatpush1.msra.mxu0 %v227
        %250 = vmatprep.subr.mxu0 0.0
        %251 = vmatpush1.msra.mxu0 %v228
        %252 = vmatprep.subr.mxu0 0.0
        %253 = vmatpush1.msra.mxu0 %v229
        %254 = vmatprep.subr.mxu0 0.0
        %255 = vmatpush1.msra.mxu0 %v230
        %256 = vmatprep.subr.mxu0 0.0
        %257 = vmatpush1.msra.mxu0 %v231
        %258 = vmatprep.subr.mxu0 0.0
        %259 = vmatpush1.msra.mxu0 0.0
        %260 = vmatprep.subr.mxu0 0.0
        %261 = vmatpush1.msra.mxu0 0.0
        %262 = vmatprep.subr.mxu0 0.0
        %263 = vmatpush1.msra.mxu0 0.0
        %264 = vmatprep.subr.mxu0 0.0
        %265 = vmatpush1.msra.mxu0 0.0
        %266 = vmatprep.subr.mxu0 0.0
        %267 = vmatpush1.msra.mxu0 0.0
        %268 = vmatprep.subr.mxu0 0.0
        %269 = vmatpush1.msra.mxu0 0.0
        %270 = vmatprep.subr.mxu0 0.0
        %271 = vmatpush1.msra.mxu0 0.0
        %272 = vmatprep.subr.mxu0 0.0
        %273 = vmatpush1.msra.mxu0 0.0
        %274 = vmatprep.subr.mxu0 0.0
        %275 = vmatpush1.msra.mxu0 0.0
        %276 = vmatprep.subr.mxu0 0.0
        %277 = vmatpush1.msra.mxu0 0.0
        %278 = vmatprep.subr.mxu0 0.0
        %279 = vmatpush1.msra.mxu0 0.0
        %280 = vmatprep.subr.mxu0 0.0
        %281 = vmatpush1.msra.mxu0 0.0
        %282 = vmatprep.subr.mxu0 0.0
        %283 = vmatpush1.msra.mxu0 0.0
        %284 = vmatprep.subr.mxu0 0.0
        %285 = vmatpush1.msra.mxu0 0.0
        %286 = vmatprep.subr.mxu0 0.0
        %287 = vmatpush1.msra.mxu0 0.0
        %288 = vmatprep.subr.mxu0 0.0
        %289 = vmatpush1.msra.mxu0 0.0
        %290 = vmatprep.subr.mxu0 0.0
        %291 = vmatpush1.msra.mxu0 0.0
        %292 = vmatprep.subr.mxu0 0.0
        %293 = vmatpush1.msra.mxu0 0.0
        %294 = vmatprep.subr.mxu0 0.0
        %295 = vmatpush1.msra.mxu0 0.0
        %296 = vmatprep.subr.mxu0 0.0
        %297 = vmatpush1.msra.mxu0 0.0
        %298 = vmatprep.subr.mxu0 0.0
        %299 = vmatpush1.msra.mxu0 0.0
        %300 = vmatprep.subr.mxu0 0.0
        %301 = vmatpush1.msra.mxu0 0.0
        %302 = vmatprep.subr.mxu0 0.0
        %303 = vmatpush1.msra.mxu0 0.0
        %304 = vmatprep.subr.mxu0 0.0
        %305 = vmatpush1.msra.mxu0 0.0
        %306 = vmatprep.mubr.f32.mxu0 0.0
        %307 = vmatmul.mubr.f32.gmra.mrb[0].mxu0 %v240
        %v308 = vpop.f32.mrb[0].mxu0
        %v309 = vadd.f32 %v237, %v308
        %v310 = vpop.f32.mrb[0].mxu0
        %311 = vdwg.mxu0
        %v312 = vmul.f32 %v309, 0.5
        %v313 = vmul.f32 %v309, 0.70710677
        %v314 = verf.f32.pop %v313
        %v315 = vadd.f32 %v314, 1.0
        %v316 = vmul.f32 %v312, %v315
        %v317 = vld [vmem:[%s3] sm:$0xff]
        %v318 = vld [vmem:[%s3 + $0x8] sm:$0xff]
        %v319 = vld [vmem:[%s3 + $0x10] sm:$0xff]
        %v320 = vld [vmem:[%s3 + $0x18] sm:$0xff]
        %v321 = vld [vmem:[%s3 + $0x20] sm:$0xff]
        %v322 = vld [vmem:[%s3 + $0x28] sm:$0xff]
        %v323 = vld [vmem:[%s3 + $0x30] sm:$0xff]
        %v324 = vld [vmem:[%s3 + $0x38] sm:$0xff]
        %v325 = vld [vmem:[%s3 + $0x40] sm:$0xff]
        %v326 = vld [vmem:[%s3 + $0x48] sm:$0xff]
        %v327 = vld [vmem:[%s3 + $0x50] sm:$0xff]
        %v328 = vld [vmem:[%s3 + $0x58] sm:$0xff]
        %v329 = vld [vmem:[%s3 + $0x60] sm:$0xff]
        %v330 = vld [vmem:[%s3 + $0x68] sm:$0xff]
        %v331 = vld [vmem:[%s3 + $0x70] sm:$0xff]
        %v332 = vld [vmem:[%s3 + $0x78] sm:$0xff]
        %333 = vmatprep.subr.mxu0 0.0
        %334 = vmatpush1.msra.mxu0 %v317
        %335 = vmatprep.subr.mxu0 0.0
        %336 = vmatpush1.msra.mxu0 %v318
        %337 = vmatprep.subr.mxu0 0.0
        %338 = vmatpush1.msra.mxu0 %v319
        %339 = vmatprep.subr.mxu0 0.0
        %340 = vmatpush1.msra.mxu0 %v320
        %341 = vmatprep.subr.mxu0 0.0
        %342 = vmatpush1.msra.mxu0 %v321
        %343 = vmatprep.subr.mxu0 0.0
        %344 = vmatpush1.msra.mxu0 %v322
        %345 = vmatprep.subr.mxu0 0.0
        %346 = vmatpush1.msra.mxu0 %v323
        %347 = vmatprep.subr.mxu0 0.0
        %348 = vmatpush1.msra.mxu0 %v324
        %349 = vmatprep.subr.mxu0 0.0
        %350 = vmatpush1.msra.mxu0 %v325
        %351 = vmatprep.subr.mxu0 0.0
        %352 = vmatpush1.msra.mxu0 %v326
        %353 = vmatprep.subr.mxu0 0.0
        %354 = vmatpush1.msra.mxu0 %v327
        %355 = vmatprep.subr.mxu0 0.0
        %356 = vmatpush1.msra.mxu0 %v328
        %357 = vmatprep.subr.mxu0 0.0
        %358 = vmatpush1.msra.mxu0 %v329
        %359 = vmatprep.subr.mxu0 0.0
        %360 = vmatpush1.msra.mxu0 %v330
        %361 = vmatprep.subr.mxu0 0.0
        %362 = vmatpush1.msra.mxu0 %v331
        %363 = vmatprep.subr.mxu0 0.0
        %364 = vmatpush1.msra.mxu0 %v332
        %365 = vmatprep.subr.mxu0 0.0
        %366 = vmatpush1.msra.mxu0 0.0
        %367 = vmatprep.subr.mxu0 0.0
        %368 = vmatpush1.msra.mxu0 0.0
        %369 = vmatprep.subr.mxu0 0.0
        %370 = vmatpush1.msra.mxu0 0.0
        %371 = vmatprep.subr.mxu0 0.0
        %372 = vmatpush1.msra.mxu0 0.0
        %373 = vmatprep.subr.mxu0 0.0
        %374 = vmatpush1.msra.mxu0 0.0
        %375 = vmatprep.subr.mxu0 0.0
        %376 = vmatpush1.msra.mxu0 0.0
        %377 = vmatprep.subr.mxu0 0.0
        %378 = vmatpush1.msra.mxu0 0.0
        %379 = vmatprep.subr.mxu0 0.0
        %380 = vmatpush1.msra.mxu0 0.0
        %381 = vmatprep.subr.mxu0 0.0
        %382 = vmatpush1.msra.mxu0 0.0
        %383 = vmatprep.subr.mxu0 0.0
        %384 = vmatpush1.msra.mxu0 0.0
        %385 = vmatprep.subr.mxu0 0.0
        %386 = vmatpush1.msra.mxu0 0.0
        %387 = vmatprep.subr.mxu0 0.0
        %388 = vmatpush1.msra.mxu0 0.0
        %389 = vmatprep.subr.mxu0 0.0
        %390 = vmatpush1.msra.mxu0 0.0
        %391 = vmatprep.subr.mxu0 0.0
        %392 = vmatpush1.msra.mxu0 0.0
        %393 = vmatprep.subr.mxu0 0.0
        %394 = vmatpush1.msra.mxu0 0.0
        %395 = vmatprep.subr.mxu0 0.0
        %396 = vmatpush1.msra.mxu0 0.0
        %397 = vmatprep.mubr.f32.mxu0 0.0
        %398 = vmatmul.mubr.f32.gmra.mrb[0].mxu0 %v316
        %v399 = vpop.f32.mrb[0].mxu0
        %v400 = vadd.f32 0.0, %v399
        %v401 = vpop.f32.mrb[0].mxu0
        %402 = vdwg.mxu0
        %v403 = vadd.f32 %v222, %v400
        %404 = vst.msk [vmem:[#allocation2] sm:$0xff] %vm220, %v403
        %v405 = vld [vmem:[#allocation2] sm:$0xff]
        %v406 = vld [vmem:[%s219] sm:$0xff]
        %s407 = scalar_lea.vmem %s1, 8
        %v408 = vld [vmem:[%s407] sm:$0xff]
        %v409 = vld [vmem:[%s407 + $0x10] sm:$0xff]
        %v410 = vld [vmem:[%s407 + $0x20] sm:$0xff]
        %v411 = vld [vmem:[%s407 + $0x30] sm:$0xff]
        %v412 = vld [vmem:[%s407 + $0x40] sm:$0xff]
        %v413 = vld [vmem:[%s407 + $0x50] sm:$0xff]
        %v414 = vld [vmem:[%s407 + $0x60] sm:$0xff]
        %v415 = vld [vmem:[%s407 + $0x70] sm:$0xff]
        %s416 = scalar_lea.vmem %s2, 1
        %v417 = vld [vmem:[%s416] sm:$0x1]
        %v419 = vlaneseq
        %v420 = vshrl.u32 %v419, 7
        %v421 = vsub.s32 0, %v420
        %v422 = vrot.slane %v417, %v421
        %v425 = vsel %vm220, %v406, 0
        %427 = vmatprep.subr.mxu0 0.0
        %428 = vmatpush1.msra.mxu0 %v408
        %429 = vmatprep.subr.mxu0 0.0
        %430 = vmatpush1.msra.mxu0 %v409
        %431 = vmatprep.subr.mxu0 0.0
        %432 = vmatpush1.msra.mxu0 %v410
        %433 = vmatprep.subr.mxu0 0.0
        %434 = vmatpush1.msra.mxu0 %v411
        %435 = vmatprep.subr.mxu0 0.0
        %436 = vmatpush1.msra.mxu0 %v412
        %437 = vmatprep.subr.mxu0 0.0
        %438 = vmatpush1.msra.mxu0 %v413
        %439 = vmatprep.subr.mxu0 0.0
        %440 = vmatpush1.msra.mxu0 %v414
        %441 = vmatprep.subr.mxu0 0.0
        %442 = vmatpush1.msra.mxu0 %v415
        %443 = vmatprep.subr.mxu0 0.0
        %444 = vmatpush1.msra.mxu0 0.0
        %445 = vmatprep.subr.mxu0 0.0
        %446 = vmatpush1.msra.mxu0 0.0
        %447 = vmatprep.subr.mxu0 0.0
        %448 = vmatpush1.msra.mxu0 0.0
        %449 = vmatprep.subr.mxu0 0.0
        %450 = vmatpush1.msra.mxu0 0.0
        %451 = vmatprep.subr.mxu0 0.0
        %452 = vmatpush1.msra.mxu0 0.0
        %453 = vmatprep.subr.mxu0 0.0
        %454 = vmatpush1.msra.mxu0 0.0
        %455 = vmatprep.subr.mxu0 0.0
        %456 = vmatpush1.msra.mxu0 0.0
        %457 = vmatprep.subr.mxu0 0.0
        %458 = vmatpush1.msra.mxu0 0.0
        %459 = vmatprep.subr.mxu0 0.0
        %460 = vmatpush1.msra.mxu0 0.0
        %461 = vmatprep.subr.mxu0 0.0
        %462 = vmatpush1.msra.mxu0 0.0
        %463 = vmatprep.subr.mxu0 0.0
        %464 = vmatpush1.msra.mxu0 0.0
        %465 = vmatprep.subr.mxu0 0.0
        %466 = vmatpush1.msra.mxu0 0.0
        %467 = vmatprep.subr.mxu0 0.0
        %468 = vmatpush1.msra.mxu0 0.0
        %469 = vmatprep.subr.mxu0 0.0
        %470 = vmatpush1.msra.mxu0 0.0
        %471 = vmatprep.subr.mxu0 0.0
        %472 = vmatpush1.msra.mxu0 0.0
        %473 = vmatprep.subr.mxu0 0.0
        %474 = vmatpush1.msra.mxu0 0.0
        %475 = vmatprep.subr.mxu0 0.0
        %476 = vmatpush1.msra.mxu0 0.0
        %477 = vmatprep.subr.mxu0 0.0
        %478 = vmatpush1.msra.mxu0 0.0
        %479 = vmatprep.subr.mxu0 0.0
        %480 = vmatpush1.msra.mxu0 0.0
        %481 = vmatprep.subr.mxu0 0.0
        %482 = vmatpush1.msra.mxu0 0.0
        %483 = vmatprep.subr.mxu0 0.0
        %484 = vmatpush1.msra.mxu0 0.0
        %485 = vmatprep.subr.mxu0 0.0
        %486 = vmatpush1.msra.mxu0 0.0
        %487 = vmatprep.subr.mxu0 0.0
        %488 = vmatpush1.msra.mxu0 0.0
        %489 = vmatprep.subr.mxu0 0.0
        %490 = vmatpush1.msra.mxu0 0.0
        %491 = vmatprep.mubr.f32.mxu0 0.0
        %492 = vmatmul.mubr.f32.gmra.mrb[0].mxu0 %v425
        %v493 = vpop.f32.mrb[0].mxu0
        %v494 = vadd.f32 %v422, %v493
        %v495 = vpop.f32.mrb[0].mxu0
        %496 = vdwg.mxu0
        %v497 = vmul.f32 %v494, 0.5
        %v498 = vmul.f32 %v494, 0.70710677
        %v499 = verf.f32.pop %v498
        %v500 = vadd.f32 %v499, 1.0
        %v501 = vmul.f32 %v497, %v500
        %s502 = scalar_lea.vmem %s3, 128
        %v503 = vld [vmem:[%s502] sm:$0xff]
        %v504 = vld [vmem:[%s502 + $0x8] sm:$0xff]
        %v505 = vld [vmem:[%s502 + $0x10] sm:$0xff]
        %v506 = vld [vmem:[%s502 + $0x18] sm:$0xff]
        %v507 = vld [vmem:[%s502 + $0x20] sm:$0xff]
        %v508 = vld [vmem:[%s502 + $0x28] sm:$0xff]
        %v509 = vld [vmem:[%s502 + $0x30] sm:$0xff]
        %v510 = vld [vmem:[%s502 + $0x38] sm:$0xff]
        %v511 = vld [vmem:[%s502 + $0x40] sm:$0xff]
        %v512 = vld [vmem:[%s502 + $0x48] sm:$0xff]
        %v513 = vld [vmem:[%s502 + $0x50] sm:$0xff]
        %v514 = vld [vmem:[%s502 + $0x58] sm:$0xff]
        %v515 = vld [vmem:[%s502 + $0x60] sm:$0xff]
        %v516 = vld [vmem:[%s502 + $0x68] sm:$0xff]
        %v517 = vld [vmem:[%s502 + $0x70] sm:$0xff]
        %v518 = vld [vmem:[%s502 + $0x78] sm:$0xff]
        %519 = vmatprep.subr.mxu0 0.0
        %520 = vmatpush1.msra.mxu0 %v503
        %521 = vmatprep.subr.mxu0 0.0
        %522 = vmatpush1.msra.mxu0 %v504
        %523 = vmatprep.subr.mxu0 0.0
        %524 = vmatpush1.msra.mxu0 %v505
        %525 = vmatprep.subr.mxu0 0.0
        %526 = vmatpush1.msra.mxu0 %v506
        %527 = vmatprep.subr.mxu0 0.0
        %528 = vmatpush1.msra.mxu0 %v507
        %529 = vmatprep.subr.mxu0 0.0
        %530 = vmatpush1.msra.mxu0 %v508
        %531 = vmatprep.subr.mxu0 0.0
        %532 = vmatpush1.msra.mxu0 %v509
        %533 = vmatprep.subr.mxu0 0.0
        %534 = vmatpush1.msra.mxu0 %v510
        %535 = vmatprep.subr.mxu0 0.0
        %536 = vmatpush1.msra.mxu0 %v511
        %537 = vmatprep.subr.mxu0 0.0
        %538 = vmatpush1.msra.mxu0 %v512
        %539 = vmatprep.subr.mxu0 0.0
        %540 = vmatpush1.msra.mxu0 %v513
        %541 = vmatprep.subr.mxu0 0.0
        %542 = vmatpush1.msra.mxu0 %v514
        %543 = vmatprep.subr.mxu0 0.0
        %544 = vmatpush1.msra.mxu0 %v515
        %545 = vmatprep.subr.mxu0 0.0
        %546 = vmatpush1.msra.mxu0 %v516
        %547 = vmatprep.subr.mxu0 0.0
        %548 = vmatpush1.msra.mxu0 %v517
        %549 = vmatprep.subr.mxu0 0.0
        %550 = vmatpush1.msra.mxu0 %v518
        %551 = vmatprep.subr.mxu0 0.0
        %552 = vmatpush1.msra.mxu0 0.0
        %553 = vmatprep.subr.mxu0 0.0
        %554 = vmatpush1.msra.mxu0 0.0
        %555 = vmatprep.subr.mxu0 0.0
        %556 = vmatpush1.msra.mxu0 0.0
        %557 = vmatprep.subr.mxu0 0.0
        %558 = vmatpush1.msra.mxu0 0.0
        %559 = vmatprep.subr.mxu0 0.0
        %560 = vmatpush1.msra.mxu0 0.0
        %561 = vmatprep.subr.mxu0 0.0
        %562 = vmatpush1.msra.mxu0 0.0
        %563 = vmatprep.subr.mxu0 0.0
        %564 = vmatpush1.msra.mxu0 0.0
        %565 = vmatprep.subr.mxu0 0.0
        %566 = vmatpush1.msra.mxu0 0.0
        %567 = vmatprep.subr.mxu0 0.0
        %568 = vmatpush1.msra.mxu0 0.0
        %569 = vmatprep.subr.mxu0 0.0
        %570 = vmatpush1.msra.mxu0 0.0
        %571 = vmatprep.subr.mxu0 0.0
        %572 = vmatpush1.msra.mxu0 0.0
        %573 = vmatprep.subr.mxu0 0.0
        %574 = vmatpush1.msra.mxu0 0.0
        %575 = vmatprep.subr.mxu0 0.0
        %576 = vmatpush1.msra.mxu0 0.0
        %577 = vmatprep.subr.mxu0 0.0
        %578 = vmatpush1.msra.mxu0 0.0
        %579 = vmatprep.subr.mxu0 0.0
        %580 = vmatpush1.msra.mxu0 0.0
        %581 = vmatprep.subr.mxu0 0.0
        %582 = vmatpush1.msra.mxu0 0.0
        %583 = vmatprep.mubr.f32.mxu0 0.0
        %584 = vmatmul.mubr.f32.gmra.mrb[0].mxu0 %v501
        %v585 = vpop.f32.mrb[0].mxu0
        %v586 = vadd.f32 0.0, %v585
        %v587 = vpop.f32.mrb[0].mxu0
        %588 = vdwg.mxu0
        %v589 = vadd.f32 %v405, %v586
        %590 = vst.msk [vmem:[#allocation2] sm:$0xff] %vm220, %v589
        %v591 = vld [vmem:[#allocation2] sm:$0xff]
        %v592 = vld [vmem:[%s4] sm:$0x1]
        %v594 = vlaneseq
        %v595 = vshrl.u32 %v594, 7
        %v596 = vsub.s32 0, %v595
        %v597 = vrot.slane %v592, %v596
        %v599 = vadd.f32 %v591, %v597
        %600 = vst.msk [vmem:[%s215] sm:$0xff] %vm220, %v599
        %s601 = sand.u32 %s137, 1
        %s602 = scalar_lea.sflag [#allocation4], %s601
        %s603 = sand.u32 %s137, 1
        %s604 = smul.addr %s603, 8
        %s605 = scalar_lea.vmem [#allocation3], %s604
        // Predicated region
        $region41: #{tpu_custom_call.1} parent=39 // pred_check
          %p606 = pneg %p147
        $region42: #{tpu_custom_call.1} parent=39 // pred_check_branch
          %608 = sbr.rel (%p606) target = $region44
        $region43: #{tpu_custom_call.1} parent=39 // pred_region
          %s610 = ssub.s32 128, 128
          %611 = vsyncadd %s602, %s610
          %s612 = smul.addr %s19, 128
          %s613 = scalar_lea.hbm %s5, %s612
          %s615 = sshll.u32 %s605, 4
          %s616 = int_to_ptr.vmem [resolvable:$true] %s615
          %618 = dma.vmem_to_hbm [thread:$0]  %s616, 128, %s613, %s602
        $region44: #{tpu_custom_call.1} parent=39 // pred_fallthru
          _
      $region40: #{tpu_custom_call.1} parent=5 // pred_fallthru
        _
      %p619 = scmp.le.s32.totalorder 2, %s14
      // Predicated region
      $region45: #{tpu_custom_call.1} parent=5 // pred_check
        %p620 = pneg %p619
      $region46: #{tpu_custom_call.1} parent=5 // pred_check_branch
        %622 = sbr.rel (%p620) target = $region48
      $region47: #{tpu_custom_call.1} parent=5 // pred_region
        %s623 = ssub.s32 %s14, 2
        // Predicated region
        $region49: #{tpu_custom_call.1} parent=47 // pred_check
          %p624 = pneg %p153
        $region50: #{tpu_custom_call.1} parent=47 // pred_check_branch
          %626 = sbr.rel (%p624) target = $region52
        $region51: #{tpu_custom_call.1} parent=47 // pred_region
          %s627 = sand.u32 %s138, 1
          %s628 = scalar_lea.sflag [#allocation4], %s627
          %s629 = sand.u32 %s138, 1
          %s630 = smul.addr %s629, 8
          %s631 = scalar_lea.vmem [#allocation3], %s630
          %632 = dma.done %s628, 128
        $region52: #{tpu_custom_call.1} parent=47 // pred_fallthru
          _
      $region48: #{tpu_custom_call.1} parent=5 // pred_fallthru
        _
    $region6: #{tpu_custom_call.1} parent=1 // loop_footer
      %s18 = sadd.s32 1, %s14
    $region7: #{tpu_custom_call.1} parent=1 // loop_footer_branch
      %13 = sbr.rel target = $region3
    $region8: #{tpu_custom_call.1} parent=1 // loop_exit
      _
    %633 = vsyncpa [#allocation4], 1
    %s634 = scalar_lea.sflag [#allocation4], 1
    %635 = vsyncpa %s634, 1

// kernel: tpu_custom_call.1
$region0: #{tpu_custom_call.1}
  #allocation0 [shape = 'u32[]', space=smem, size = 0x4, offset = 0x4, fixed_abs, tag = 'smem constant byte address 0x4 - core index']
  #allocation1 [shape = 'u32[144,128]{1,0:T(1,128)}', space=vmem, size = 0x12000, scoped, tag = 'internal scratch']
  #allocation2 [shape = 'f32[8,64]{1,0:T(8,128)}', space=vmem, size = 0x1000, scoped, tag = 'scratch operand']
  %s0 = inlined_call_operand.vmem [shape: f32[18,64], index: 0, kind: input, shape index: {}]
  %s1 = inlined_call_operand.vmem [shape: f32[64,256], index: 1, kind: input, shape index: {}]
  %s2 = inlined_call_operand.vmem [shape: f32[1,256], index: 2, kind: input, shape index: {}]
  %s3 = inlined_call_operand.vmem [shape: f32[256,64], index: 3, kind: input, shape index: {}]
  %s4 = inlined_call_operand.vmem [shape: f32[1,64], index: 4, kind: input, shape index: {}]
  %s5 = inlined_call_operand.hbm [shape: f32[18,64], index: 5, kind: output, shape index: {}]
  %s6 = sld [smem:[#allocation0]]
  $region53: #{tpu_custom_call.1} parent=0
    _
  %s8 = ssub.s32 1, %s6
  %s9 = scalar_select 0, %s8, %s6
  $region1: #{tpu_custom_call.1} parent=0
    #allocation3 [shape = 'u8[8192]{0}', space=vmem, size = 0x2000, scoped, tag = 'output window, operand 0']
    #allocation4 [shape = 's32[2]{0}', space=sflag, size = 0x8, scoped, tag = 'scoped memory for tpu_custom_call.1']
    %10 = vsyncpa [#allocation4], 0
    %s11 = scalar_lea.sflag [#allocation4], 1
    %12 = vsyncpa %s11, 0
    loop: start=0, step=1, limit=5
    $region2: #{tpu_custom_call.1} parent=1 // loop_pre_header
      _
    $region3: #{tpu_custom_call.1} parent=1 // loop_header
      %s14 = sphi 0, %s18
      %p15 = scmp.ge.s32.totalorder %s14, 5
      %s24 = sphi 0, %s26
      %s27 = sphi 0, %s24
      %s28 = sphi 0, %s27
      %s44 = sphi 0, %s28
      %s48 = sphi 0, %s48
      %s50 = sphi 0, %s48
      %s51 = sphi 0, %s50
      %s65 = sphi 0, %s51
      %s69 = sphi 0, %s69
      %s71 = sphi 0, %s69
      %s72 = sphi 0, %s71
      %s86 = sphi 0, %s72
      %s90 = sphi 0, %s90
      %s92 = sphi 0, %s90
      %s93 = sphi 0, %s92
      %s107 = sphi 0, %s93
      %s111 = sphi 0, %s111
      %s113 = sphi 0, %s111
      %s114 = sphi 0, %s113
      %s128 = sphi 0, %s114
      %s134 = sphi 0, %s136
      %s137 = sphi 0, %s134
      %s138 = sphi 0, %s137
      %s154 = sphi 0, %s138
    $region4: #{tpu_custom_call.1} parent=1 // loop_header_branch
      %17 = sbr.rel (%p15) target = $region8
    $region5: #{tpu_custom_call.1} parent=1 // loop_body
      %s19 = ssub.s32 %s14, 1
      %s20 = ssub.s32 %s14, 2
      %s21 = sadd.s32 %s14, 1
      %s22 = ssub.s32 %s14, %s21
      %p23 = scmp.eq.s32.totalorder %s22, 0
      %s25 = sadd.s32 %s24, 1
      %s26 = scalar_select %p23, %s24, %s25
      %p29 = pneg %p23
      %p30 = scmp.eq.s32.totalorder %s14, 2
      %p31 = por %p29, %p30
      %p32 = scmp.ne.s32.totalorder %s24, %s27
      %p33 = scmp.eq.s32.totalorder %s14, 0
      %p34 = por %p32, %p33
      %p35 = scmp.ne.s32.totalorder %s24, %s27
      %p36 = scmp.eq.s32.totalorder %s19, 2
      %p37 = por %p35, %p36
      %p38 = scmp.ne.s32.totalorder %s27, %s28
      %p39 = scmp.eq.s32.totalorder %s19, 0
      %p40 = por %p38, %p39
      %p41 = scmp.ne.s32.totalorder %s27, %s28
      %p42 = scmp.eq.s32.totalorder %s20, 2
      %p43 = por %p41, %p42
      %p45 = scmp.ne.s32.totalorder %s28, %s44
      %p46 = scmp.eq.s32.totalorder %s20, 0
      %p47 = por %p45, %p46
      %s49 = sadd.s32 %s48, 1
      %p52 = scmp.eq.s32.totalorder %s14, 2
      %p53 = scmp.ne.s32.totalorder %s48, %s50
      %p54 = scmp.eq.s32.totalorder %s14, 0
      %p55 = por %p53, %p54
      %p56 = scmp.ne.s32.totalorder %s48, %s50
      %p57 = scmp.eq.s32.totalorder %s19, 2
      %p58 = por %p56, %p57
      %p59 = scmp.ne.s32.totalorder %s50, %s51
      %p60 = scmp.eq.s32.totalorder %s19, 0
      %p61 = por %p59, %p60
      %p62 = scmp.ne.s32.totalorder %s50, %s51
      %p63 = scmp.eq.s32.totalorder %s20, 2
      %p64 = por %p62, %p63
      %p66 = scmp.ne.s32.totalorder %s51, %s65
      %p67 = scmp.eq.s32.totalorder %s20, 0
      %p68 = por %p66, %p67
      %s70 = sadd.s32 %s69, 1
      %p73 = scmp.eq.s32.totalorder %s14, 2
      %p74 = scmp.ne.s32.totalorder %s69, %s71
      %p75 = scmp.eq.s32.totalorder %s14, 0
      %p76 = por %p74, %p75
      %p77 = scmp.ne.s32.totalorder %s69, %s71
      %p78 = scmp.eq.s32.totalorder %s19, 2
      %p79 = por %p77, %p78
      %p80 = scmp.ne.s32.totalorder %s71, %s72
      %p81 = scmp.eq.s32.totalorder %s19, 0
      %p82 = por %p80, %p81
      %p83 = scmp.ne.s32.totalorder %s71, %s72
      %p84 = scmp.eq.s32.totalorder %s20, 2
      %p85 = por %p83, %p84
      %p87 = scmp.ne.s32.totalorder %s72, %s86
      %p88 = scmp.eq.s32.totalorder %s20, 0
      %p89 = por %p87, %p88
      %s91 = sadd.s32 %s90, 1
      %p94 = scmp.eq.s32.totalorder %s14, 2
      %p95 = scmp.ne.s32.totalorder %s90, %s92
      %p96 = scmp.eq.s32.totalorder %s14, 0
      %p97 = por %p95, %p96
      %p98 = scmp.ne.s32.totalorder %s90, %s92
      %p99 = scmp.eq.s32.totalorder %s19, 2
      %p100 = por %p98, %p99
      %p101 = scmp.ne.s32.totalorder %s92, %s93
      %p102 = scmp.eq.s32.totalorder %s19, 0
      %p103 = por %p101, %p102
      %p104 = scmp.ne.s32.totalorder %s92, %s93
      %p105 = scmp.eq.s32.totalorder %s20, 2
      %p106 = por %p104, %p105
      %p108 = scmp.ne.s32.totalorder %s93, %s107
      %p109 = scmp.eq.s32.totalorder %s20, 0
      %p110 = por %p108, %p109
      %s112 = sadd.s32 %s111, 1
      %p115 = scmp.eq.s32.totalorder %s14, 2
      %p116 = scmp.ne.s32.totalorder %s111, %s113
      %p117 = scmp.eq.s32.totalorder %s14, 0
      %p118 = por %p116, %p117
      %p119 = scmp.ne.s32.totalorder %s111, %s113
      %p120 = scmp.eq.s32.totalorder %s19, 2
      %p121 = por %p119, %p120
      %p122 = scmp.ne.s32.totalorder %s113, %s114
      %p123 = scmp.eq.s32.totalorder %s19, 0
      %p124 = por %p122, %p123
      %p125 = scmp.ne.s32.totalorder %s113, %s114
      %p126 = scmp.eq.s32.totalorder %s20, 2
      %p127 = por %p125, %p126
      %p129 = scmp.ne.s32.totalorder %s114, %s128
      %p130 = scmp.eq.s32.totalorder %s20, 0
      %p131 = por %p129, %p130
      %s132 = ssub.s32 %s14, %s21
      %p133 = scmp.eq.s32.totalorder %s132, 0
      %s135 = sadd.s32 %s134, 1
      %s136 = scalar_select %p133, %s134, %s135
      %p139 = pneg %p133
      %p140 = scmp.eq.s32.totalorder %s14, 2
      %p141 = por %p139, %p140
      %p142 = scmp.ne.s32.totalorder %s134, %s137
      %p143 = scmp.eq.s32.totalorder %s14, 0
      %p144 = por %p142, %p143
      %p145 = scmp.ne.s32.totalorder %s134, %s137
      %p146 = scmp.eq.s32.totalorder %s19, 2
      %p147 = por %p145, %p146
      %p148 = scmp.ne.s32.totalorder %s137, %s138
      %p149 = scmp.eq.s32.totalorder %s19, 0
      %p150 = por %p148, %p149
      %p151 = scmp.ne.s32.totalorder %s137, %s138
      %p152 = scmp.eq.s32.totalorder %s20, 2
      %p153 = por %p151, %p152
      %p155 = scmp.ne.s32.totalorder %s138, %s154
      %p156 = scmp.eq.s32.totalorder %s20, 0
      %p157 = por %p155, %p156
      %p158 = scmp.le.s32.totalorder 1, %s14
      %p159 = scmp.lt.s32.totalorder %s14, 4
      %p160 = pnand %p158, %p159
      %p161 = pneg %p160
      // Predicated region
      $region9: #{tpu_custom_call.1} parent=5 // pred_check
        _
      $region10: #{tpu_custom_call.1} parent=5 // pred_check_branch
        %163 = sbr.rel (%p160) target = $region12
      $region11: #{tpu_custom_call.1} parent=5 // pred_region
        %s164 = ssub.s32 %s14, 1
        // Predicated region
        $region13: #{tpu_custom_call.1} parent=11 // pred_check
          %p165 = pneg %p61
        $region14: #{tpu_custom_call.1} parent=11 // pred_check_branch
          %167 = sbr.rel (%p165) target = $region16
        $region15: #{tpu_custom_call.1} parent=11 // pred_region
          _
        $region16: #{tpu_custom_call.1} parent=11 // pred_fallthru
          _
        // Predicated region
        $region17: #{tpu_custom_call.1} parent=11 // pred_check
          %p168 = pneg %p82
        $region18: #{tpu_custom_call.1} parent=11 // pred_check_branch
          %170 = sbr.rel (%p168) target = $region20
        $region19: #{tpu_custom_call.1} parent=11 // pred_region
          _
        $region20: #{tpu_custom_call.1} parent=11 // pred_fallthru
          _
        // Predicated region
        $region21: #{tpu_custom_call.1} parent=11 // pred_check
          %p171 = pneg %p103
        $region22: #{tpu_custom_call.1} parent=11 // pred_check_branch
          %173 = sbr.rel (%p171) target = $region24
        $region23: #{tpu_custom_call.1} parent=11 // pred_region
          _
        $region24: #{tpu_custom_call.1} parent=11 // pred_fallthru
          _
        // Predicated region
        $region25: #{tpu_custom_call.1} parent=11 // pred_check
          %p174 = pneg %p124
        $region26: #{tpu_custom_call.1} parent=11 // pred_check_branch
          %176 = sbr.rel (%p174) target = $region28
        $region27: #{tpu_custom_call.1} parent=11 // pred_region
          _
        $region28: #{tpu_custom_call.1} parent=11 // pred_fallthru
          _
      $region12: #{tpu_custom_call.1} parent=5 // pred_fallthru
        _
      %p177 = scmp.lt.s32.totalorder %s14, 3
      // Predicated region
      $region29: #{tpu_custom_call.1} parent=5 // pred_check
        %p178 = pneg %p177
      $region30: #{tpu_custom_call.1} parent=5 // pred_check_branch
        %180 = sbr.rel (%p178) target = $region32
      $region31: #{tpu_custom_call.1} parent=5 // pred_region
        // Predicated region
        $region33: #{tpu_custom_call.1} parent=31 // pred_check
          %p181 = pneg %p34
        $region34: #{tpu_custom_call.1} parent=31 // pred_check_branch
          %183 = sbr.rel (%p181) target = $region36
        $region35: #{tpu_custom_call.1} parent=31 // pred_region
          %p184 = scmp.lt.s32.totalorder %s14, 2
          %s185 = scalar_select %p184, %s14, 2
          %s186 = smul.addr %s185, 8
          %s187 = scalar_lea.vmem %s0, %s186
        $region36: #{tpu_custom_call.1} parent=31 // pred_fallthru
          _
      $region32: #{tpu_custom_call.1} parent=5 // pred_fallthru
        _
      %p188 = scmp.le.s32.totalorder 1, %s14
      %p189 = scmp.lt.s32.totalorder %s14, 4
      %p190 = pnand %p188, %p189
      %p191 = pneg %p190
      // Predicated region
      $region37: #{tpu_custom_call.1} parent=5 // pred_check
        _
      $region38: #{tpu_custom_call.1} parent=5 // pred_check_branch
        %193 = sbr.rel (%p190) target = $region40
      $region39: #{tpu_custom_call.1} parent=5 // pred_region
        %s194 = ssub.s32 %s14, 1
        %p195 = scmp.lt.s32.totalorder %s19, 2
        %s196 = scalar_select %p195, %s19, 2
        %s197 = smul.addr %s196, 8
        %s198 = scalar_lea.vmem %s0, %s197
        %p199 = pneg %p40
        %p200 = pneg %p37
        %p201 = pneg %p61
        %p202 = pneg %p58
        %p203 = pneg %p82
        %p204 = pneg %p79
        %p205 = pneg %p103
        %p206 = pneg %p100
        %p207 = pneg %p124
        %p208 = pneg %p121
        %p209 = pneg %p150
        %p210 = pneg %p147
        %s211 = sand.u32 %s137, 1
        %s212 = scalar_lea.sflag [#allocation4], %s211
        %s213 = sand.u32 %s137, 1
        %s214 = smul.addr %s213, 8
        %s215 = scalar_lea.vmem [#allocation3], %s214
        %p216 = scmp.lt.s32.totalorder %s19, 2
        %s217 = scalar_select %p216, %s19, 2
        %s218 = smul.addr %s217, 8
        %s219 = scalar_lea.vmem %s0, %s218
        %vm220 = vcmask 523264
        %221 = vst.msk [vmem:[#allocation2] sm:$0xff] %vm220, 0.0
        %v222 = vld [vmem:[#allocation2] sm:$0xff]
        %v223 = vld [vmem:[%s219] sm:$0xff]
        %v224 = vld [vmem:[%s1] sm:$0xff]
        %v225 = vld [vmem:[%s1 + $0x10] sm:$0xff]
        %v226 = vld [vmem:[%s1 + $0x20] sm:$0xff]
        %v227 = vld [vmem:[%s1 + $0x30] sm:$0xff]
        %v228 = vld [vmem:[%s1 + $0x40] sm:$0xff]
        %v229 = vld [vmem:[%s1 + $0x50] sm:$0xff]
        %v230 = vld [vmem:[%s1 + $0x60] sm:$0xff]
        %v231 = vld [vmem:[%s1 + $0x70] sm:$0xff]
        %v232 = vld [vmem:[%s2] sm:$0x1]
        %v234 = vlaneseq
        %v235 = vshrl.u32 %v234, 7
        %v236 = vsub.s32 0, %v235
        %v237 = vrot.slane %v232, %v236
        %v240 = vsel %vm220, %v223, 0
        %242 = vmatprep.subr.mxu0 0.0
        %243 = vmatpush1.msra.mxu0 %v224
        %244 = vmatprep.subr.mxu0 0.0
        %245 = vmatpush1.msra.mxu0 %v225
        %246 = vmatprep.subr.mxu0 0.0
        %247 = vmatpush1.msra.mxu0 %v226
        %248 = vmatprep.subr.mxu0 0.0
        %249 = vmatpush1.msra.mxu0 %v227
        %250 = vmatprep.subr.mxu0 0.0
        %251 = vmatpush1.msra.mxu0 %v228
        %252 = vmatprep.subr.mxu0 0.0
        %253 = vmatpush1.msra.mxu0 %v229
        %254 = vmatprep.subr.mxu0 0.0
        %255 = vmatpush1.msra.mxu0 %v230
        %256 = vmatprep.subr.mxu0 0.0
        %257 = vmatpush1.msra.mxu0 %v231
        %258 = vmatprep.subr.mxu0 0.0
        %259 = vmatpush1.msra.mxu0 0.0
        %260 = vmatprep.subr.mxu0 0.0
        %261 = vmatpush1.msra.mxu0 0.0
        %262 = vmatprep.subr.mxu0 0.0
        %263 = vmatpush1.msra.mxu0 0.0
        %264 = vmatprep.subr.mxu0 0.0
        %265 = vmatpush1.msra.mxu0 0.0
        %266 = vmatprep.subr.mxu0 0.0
        %267 = vmatpush1.msra.mxu0 0.0
        %268 = vmatprep.subr.mxu0 0.0
        %269 = vmatpush1.msra.mxu0 0.0
        %270 = vmatprep.subr.mxu0 0.0
        %271 = vmatpush1.msra.mxu0 0.0
        %272 = vmatprep.subr.mxu0 0.0
        %273 = vmatpush1.msra.mxu0 0.0
        %274 = vmatprep.subr.mxu0 0.0
        %275 = vmatpush1.msra.mxu0 0.0
        %276 = vmatprep.subr.mxu0 0.0
        %277 = vmatpush1.msra.mxu0 0.0
        %278 = vmatprep.subr.mxu0 0.0
        %279 = vmatpush1.msra.mxu0 0.0
        %280 = vmatprep.subr.mxu0 0.0
        %281 = vmatpush1.msra.mxu0 0.0
        %282 = vmatprep.subr.mxu0 0.0
        %283 = vmatpush1.msra.mxu0 0.0
        %284 = vmatprep.subr.mxu0 0.0
        %285 = vmatpush1.msra.mxu0 0.0
        %286 = vmatprep.subr.mxu0 0.0
        %287 = vmatpush1.msra.mxu0 0.0
        %288 = vmatprep.subr.mxu0 0.0
        %289 = vmatpush1.msra.mxu0 0.0
        %290 = vmatprep.subr.mxu0 0.0
        %291 = vmatpush1.msra.mxu0 0.0
        %292 = vmatprep.subr.mxu0 0.0
        %293 = vmatpush1.msra.mxu0 0.0
        %294 = vmatprep.subr.mxu0 0.0
        %295 = vmatpush1.msra.mxu0 0.0
        %296 = vmatprep.subr.mxu0 0.0
        %297 = vmatpush1.msra.mxu0 0.0
        %298 = vmatprep.subr.mxu0 0.0
        %299 = vmatpush1.msra.mxu0 0.0
        %300 = vmatprep.subr.mxu0 0.0
        %301 = vmatpush1.msra.mxu0 0.0
        %302 = vmatprep.subr.mxu0 0.0
        %303 = vmatpush1.msra.mxu0 0.0
        %304 = vmatprep.subr.mxu0 0.0
        %305 = vmatpush1.msra.mxu0 0.0
        %306 = vmatprep.mubr.f32.mxu0 0.0
        %307 = vmatmul.mubr.f32.gmra.mrb[0].mxu0 %v240
        %v308 = vpop.f32.mrb[0].mxu0
        %v309 = vadd.f32 %v237, %v308
        %v310 = vpop.f32.mrb[0].mxu0
        %311 = vdwg.mxu0
        %v312 = vmul.f32 %v309, 0.5
        %v313 = vmul.f32 %v309, 0.70710677
        %v314 = verf.f32.pop %v313
        %v315 = vadd.f32 %v314, 1.0
        %v316 = vmul.f32 %v312, %v315
        %v317 = vld [vmem:[%s3] sm:$0xff]
        %v318 = vld [vmem:[%s3 + $0x8] sm:$0xff]
        %v319 = vld [vmem:[%s3 + $0x10] sm:$0xff]
        %v320 = vld [vmem:[%s3 + $0x18] sm:$0xff]
        %v321 = vld [vmem:[%s3 + $0x20] sm:$0xff]
        %v322 = vld [vmem:[%s3 + $0x28] sm:$0xff]
        %v323 = vld [vmem:[%s3 + $0x30] sm:$0xff]
        %v324 = vld [vmem:[%s3 + $0x38] sm:$0xff]
        %v325 = vld [vmem:[%s3 + $0x40] sm:$0xff]
        %v326 = vld [vmem:[%s3 + $0x48] sm:$0xff]
        %v327 = vld [vmem:[%s3 + $0x50] sm:$0xff]
        %v328 = vld [vmem:[%s3 + $0x58] sm:$0xff]
        %v329 = vld [vmem:[%s3 + $0x60] sm:$0xff]
        %v330 = vld [vmem:[%s3 + $0x68] sm:$0xff]
        %v331 = vld [vmem:[%s3 + $0x70] sm:$0xff]
        %v332 = vld [vmem:[%s3 + $0x78] sm:$0xff]
        %333 = vmatprep.subr.mxu0 0.0
        %334 = vmatpush1.msra.mxu0 %v317
        %335 = vmatprep.subr.mxu0 0.0
        %336 = vmatpush1.msra.mxu0 %v318
        %337 = vmatprep.subr.mxu0 0.0
        %338 = vmatpush1.msra.mxu0 %v319
        %339 = vmatprep.subr.mxu0 0.0
        %340 = vmatpush1.msra.mxu0 %v320
        %341 = vmatprep.subr.mxu0 0.0
        %342 = vmatpush1.msra.mxu0 %v321
        %343 = vmatprep.subr.mxu0 0.0
        %344 = vmatpush1.msra.mxu0 %v322
        %345 = vmatprep.subr.mxu0 0.0
        %346 = vmatpush1.msra.mxu0 %v323
        %347 = vmatprep.subr.mxu0 0.0
        %348 = vmatpush1.msra.mxu0 %v324
        %349 = vmatprep.subr.mxu0 0.0
        %350 = vmatpush1.msra.mxu0 %v325
        %351 = vmatprep.subr.mxu0 0.0
        %352 = vmatpush1.msra.mxu0 %v326
        %353 = vmatprep.subr.mxu0 0.0
        %354 = vmatpush1.msra.mxu0 %v327
        %355 = vmatprep.subr.mxu0 0.0
        %356 = vmatpush1.msra.mxu0 %v328
        %357 = vmatprep.subr.mxu0 0.0
        %358 = vmatpush1.msra.mxu0 %v329
        %359 = vmatprep.subr.mxu0 0.0
        %360 = vmatpush1.msra.mxu0 %v330
        %361 = vmatprep.subr.mxu0 0.0
        %362 = vmatpush1.msra.mxu0 %v331
        %363 = vmatprep.subr.mxu0 0.0
        %364 = vmatpush1.msra.mxu0 %v332
        %365 = vmatprep.subr.mxu0 0.0
        %366 = vmatpush1.msra.mxu0 0.0
        %367 = vmatprep.subr.mxu0 0.0
        %368 = vmatpush1.msra.mxu0 0.0
        %369 = vmatprep.subr.mxu0 0.0
        %370 = vmatpush1.msra.mxu0 0.0
        %371 = vmatprep.subr.mxu0 0.0
        %372 = vmatpush1.msra.mxu0 0.0
        %373 = vmatprep.subr.mxu0 0.0
        %374 = vmatpush1.msra.mxu0 0.0
        %375 = vmatprep.subr.mxu0 0.0
        %376 = vmatpush1.msra.mxu0 0.0
        %377 = vmatprep.subr.mxu0 0.0
        %378 = vmatpush1.msra.mxu0 0.0
        %379 = vmatprep.subr.mxu0 0.0
        %380 = vmatpush1.msra.mxu0 0.0
        %381 = vmatprep.subr.mxu0 0.0
        %382 = vmatpush1.msra.mxu0 0.0
        %383 = vmatprep.subr.mxu0 0.0
        %384 = vmatpush1.msra.mxu0 0.0
        %385 = vmatprep.subr.mxu0 0.0
        %386 = vmatpush1.msra.mxu0 0.0
        %387 = vmatprep.subr.mxu0 0.0
        %388 = vmatpush1.msra.mxu0 0.0
        %389 = vmatprep.subr.mxu0 0.0
        %390 = vmatpush1.msra.mxu0 0.0
        %391 = vmatprep.subr.mxu0 0.0
        %392 = vmatpush1.msra.mxu0 0.0
        %393 = vmatprep.subr.mxu0 0.0
        %394 = vmatpush1.msra.mxu0 0.0
        %395 = vmatprep.subr.mxu0 0.0
        %396 = vmatpush1.msra.mxu0 0.0
        %397 = vmatprep.mubr.f32.mxu0 0.0
        %398 = vmatmul.mubr.f32.gmra.mrb[0].mxu0 %v316
        %v399 = vpop.f32.mrb[0].mxu0
        %v400 = vadd.f32 0.0, %v399
        %v401 = vpop.f32.mrb[0].mxu0
        %402 = vdwg.mxu0
        %v403 = vadd.f32 %v222, %v400
        %404 = vst.msk [vmem:[#allocation2] sm:$0xff] %vm220, %v403
        %v405 = vld [vmem:[#allocation2] sm:$0xff]
        %v406 = vld [vmem:[%s219] sm:$0xff]
        %s407 = scalar_lea.vmem %s1, 8
        %v408 = vld [vmem:[%s407] sm:$0xff]
        %v409 = vld [vmem:[%s407 + $0x10] sm:$0xff]
        %v410 = vld [vmem:[%s407 + $0x20] sm:$0xff]
        %v411 = vld [vmem:[%s407 + $0x30] sm:$0xff]
        %v412 = vld [vmem:[%s407 + $0x40] sm:$0xff]
        %v413 = vld [vmem:[%s407 + $0x50] sm:$0xff]
        %v414 = vld [vmem:[%s407 + $0x60] sm:$0xff]
        %v415 = vld [vmem:[%s407 + $0x70] sm:$0xff]
        %s416 = scalar_lea.vmem %s2, 1
        %v417 = vld [vmem:[%s416] sm:$0x1]
        %v419 = vlaneseq
        %v420 = vshrl.u32 %v419, 7
        %v421 = vsub.s32 0, %v420
        %v422 = vrot.slane %v417, %v421
        %v425 = vsel %vm220, %v406, 0
        %427 = vmatprep.subr.mxu0 0.0
        %428 = vmatpush1.msra.mxu0 %v408
        %429 = vmatprep.subr.mxu0 0.0
        %430 = vmatpush1.msra.mxu0 %v409
        %431 = vmatprep.subr.mxu0 0.0
        %432 = vmatpush1.msra.mxu0 %v410
        %433 = vmatprep.subr.mxu0 0.0
        %434 = vmatpush1.msra.mxu0 %v411
        %435 = vmatprep.subr.mxu0 0.0
        %436 = vmatpush1.msra.mxu0 %v412
        %437 = vmatprep.subr.mxu0 0.0
        %438 = vmatpush1.msra.mxu0 %v413
        %439 = vmatprep.subr.mxu0 0.0
        %440 = vmatpush1.msra.mxu0 %v414
        %441 = vmatprep.subr.mxu0 0.0
        %442 = vmatpush1.msra.mxu0 %v415
        %443 = vmatprep.subr.mxu0 0.0
        %444 = vmatpush1.msra.mxu0 0.0
        %445 = vmatprep.subr.mxu0 0.0
        %446 = vmatpush1.msra.mxu0 0.0
        %447 = vmatprep.subr.mxu0 0.0
        %448 = vmatpush1.msra.mxu0 0.0
        %449 = vmatprep.subr.mxu0 0.0
        %450 = vmatpush1.msra.mxu0 0.0
        %451 = vmatprep.subr.mxu0 0.0
        %452 = vmatpush1.msra.mxu0 0.0
        %453 = vmatprep.subr.mxu0 0.0
        %454 = vmatpush1.msra.mxu0 0.0
        %455 = vmatprep.subr.mxu0 0.0
        %456 = vmatpush1.msra.mxu0 0.0
        %457 = vmatprep.subr.mxu0 0.0
        %458 = vmatpush1.msra.mxu0 0.0
        %459 = vmatprep.subr.mxu0 0.0
        %460 = vmatpush1.msra.mxu0 0.0
        %461 = vmatprep.subr.mxu0 0.0
        %462 = vmatpush1.msra.mxu0 0.0
        %463 = vmatprep.subr.mxu0 0.0
        %464 = vmatpush1.msra.mxu0 0.0
        %465 = vmatprep.subr.mxu0 0.0
        %466 = vmatpush1.msra.mxu0 0.0
        %467 = vmatprep.subr.mxu0 0.0
        %468 = vmatpush1.msra.mxu0 0.0
        %469 = vmatprep.subr.mxu0 0.0
        %470 = vmatpush1.msra.mxu0 0.0
        %471 = vmatprep.subr.mxu0 0.0
        %472 = vmatpush1.msra.mxu0 0.0
        %473 = vmatprep.subr.mxu0 0.0
        %474 = vmatpush1.msra.mxu0 0.0
        %475 = vmatprep.subr.mxu0 0.0
        %476 = vmatpush1.msra.mxu0 0.0
        %477 = vmatprep.subr.mxu0 0.0
        %478 = vmatpush1.msra.mxu0 0.0
        %479 = vmatprep.subr.mxu0 0.0
        %480 = vmatpush1.msra.mxu0 0.0
        %481 = vmatprep.subr.mxu0 0.0
        %482 = vmatpush1.msra.mxu0 0.0
        %483 = vmatprep.subr.mxu0 0.0
        %484 = vmatpush1.msra.mxu0 0.0
        %485 = vmatprep.subr.mxu0 0.0
        %486 = vmatpush1.msra.mxu0 0.0
        %487 = vmatprep.subr.mxu0 0.0
        %488 = vmatpush1.msra.mxu0 0.0
        %489 = vmatprep.subr.mxu0 0.0
        %490 = vmatpush1.msra.mxu0 0.0
        %491 = vmatprep.mubr.f32.mxu0 0.0
        %492 = vmatmul.mubr.f32.gmra.mrb[0].mxu0 %v425
        %v493 = vpop.f32.mrb[0].mxu0
        %v494 = vadd.f32 %v422, %v493
        %v495 = vpop.f32.mrb[0].mxu0
        %496 = vdwg.mxu0
        %v497 = vmul.f32 %v494, 0.5
        %v498 = vmul.f32 %v494, 0.70710677
        %v499 = verf.f32.pop %v498
        %v500 = vadd.f32 %v499, 1.0
        %v501 = vmul.f32 %v497, %v500
        %s502 = scalar_lea.vmem %s3, 128
        %v503 = vld [vmem:[%s502] sm:$0xff]
        %v504 = vld [vmem:[%s502 + $0x8] sm:$0xff]
        %v505 = vld [vmem:[%s502 + $0x10] sm:$0xff]
        %v506 = vld [vmem:[%s502 + $0x18] sm:$0xff]
        %v507 = vld [vmem:[%s502 + $0x20] sm:$0xff]
        %v508 = vld [vmem:[%s502 + $0x28] sm:$0xff]
        %v509 = vld [vmem:[%s502 + $0x30] sm:$0xff]
        %v510 = vld [vmem:[%s502 + $0x38] sm:$0xff]
        %v511 = vld [vmem:[%s502 + $0x40] sm:$0xff]
        %v512 = vld [vmem:[%s502 + $0x48] sm:$0xff]
        %v513 = vld [vmem:[%s502 + $0x50] sm:$0xff]
        %v514 = vld [vmem:[%s502 + $0x58] sm:$0xff]
        %v515 = vld [vmem:[%s502 + $0x60] sm:$0xff]
        %v516 = vld [vmem:[%s502 + $0x68] sm:$0xff]
        %v517 = vld [vmem:[%s502 + $0x70] sm:$0xff]
        %v518 = vld [vmem:[%s502 + $0x78] sm:$0xff]
        %519 = vmatprep.subr.mxu0 0.0
        %520 = vmatpush1.msra.mxu0 %v503
        %521 = vmatprep.subr.mxu0 0.0
        %522 = vmatpush1.msra.mxu0 %v504
        %523 = vmatprep.subr.mxu0 0.0
        %524 = vmatpush1.msra.mxu0 %v505
        %525 = vmatprep.subr.mxu0 0.0
        %526 = vmatpush1.msra.mxu0 %v506
        %527 = vmatprep.subr.mxu0 0.0
        %528 = vmatpush1.msra.mxu0 %v507
        %529 = vmatprep.subr.mxu0 0.0
        %530 = vmatpush1.msra.mxu0 %v508
        %531 = vmatprep.subr.mxu0 0.0
        %532 = vmatpush1.msra.mxu0 %v509
        %533 = vmatprep.subr.mxu0 0.0
        %534 = vmatpush1.msra.mxu0 %v510
        %535 = vmatprep.subr.mxu0 0.0
        %536 = vmatpush1.msra.mxu0 %v511
        %537 = vmatprep.subr.mxu0 0.0
        %538 = vmatpush1.msra.mxu0 %v512
        %539 = vmatprep.subr.mxu0 0.0
        %540 = vmatpush1.msra.mxu0 %v513
        %541 = vmatprep.subr.mxu0 0.0
        %542 = vmatpush1.msra.mxu0 %v514
        %543 = vmatprep.subr.mxu0 0.0
        %544 = vmatpush1.msra.mxu0 %v515
        %545 = vmatprep.subr.mxu0 0.0
        %546 = vmatpush1.msra.mxu0 %v516
        %547 = vmatprep.subr.mxu0 0.0
        %548 = vmatpush1.msra.mxu0 %v517
        %549 = vmatprep.subr.mxu0 0.0
        %550 = vmatpush1.msra.mxu0 %v518
        %551 = vmatprep.subr.mxu0 0.0
        %552 = vmatpush1.msra.mxu0 0.0
        %553 = vmatprep.subr.mxu0 0.0
        %554 = vmatpush1.msra.mxu0 0.0
        %555 = vmatprep.subr.mxu0 0.0
        %556 = vmatpush1.msra.mxu0 0.0
        %557 = vmatprep.subr.mxu0 0.0
        %558 = vmatpush1.msra.mxu0 0.0
        %559 = vmatprep.subr.mxu0 0.0
        %560 = vmatpush1.msra.mxu0 0.0
        %561 = vmatprep.subr.mxu0 0.0
        %562 = vmatpush1.msra.mxu0 0.0
        %563 = vmatprep.subr.mxu0 0.0
        %564 = vmatpush1.msra.mxu0 0.0
        %565 = vmatprep.subr.mxu0 0.0
        %566 = vmatpush1.msra.mxu0 0.0
        %567 = vmatprep.subr.mxu0 0.0
        %568 = vmatpush1.msra.mxu0 0.0
        %569 = vmatprep.subr.mxu0 0.0
        %570 = vmatpush1.msra.mxu0 0.0
        %571 = vmatprep.subr.mxu0 0.0
        %572 = vmatpush1.msra.mxu0 0.0
        %573 = vmatprep.subr.mxu0 0.0
        %574 = vmatpush1.msra.mxu0 0.0
        %575 = vmatprep.subr.mxu0 0.0
        %576 = vmatpush1.msra.mxu0 0.0
        %577 = vmatprep.subr.mxu0 0.0
        %578 = vmatpush1.msra.mxu0 0.0
        %579 = vmatprep.subr.mxu0 0.0
        %580 = vmatpush1.msra.mxu0 0.0
        %581 = vmatprep.subr.mxu0 0.0
        %582 = vmatpush1.msra.mxu0 0.0
        %583 = vmatprep.mubr.f32.mxu0 0.0
        %584 = vmatmul.mubr.f32.gmra.mrb[0].mxu0 %v501
        %v585 = vpop.f32.mrb[0].mxu0
        %v586 = vadd.f32 0.0, %v585
        %v587 = vpop.f32.mrb[0].mxu0
        %588 = vdwg.mxu0
        %v589 = vadd.f32 %v405, %v586
        %590 = vst.msk [vmem:[#allocation2] sm:$0xff] %vm220, %v589
        %v591 = vld [vmem:[#allocation2] sm:$0xff]
        %v592 = vld [vmem:[%s4] sm:$0x1]
        %v594 = vlaneseq
        %v595 = vshrl.u32 %v594, 7
        %v596 = vsub.s32 0, %v595
        %v597 = vrot.slane %v592, %v596
        %v599 = vadd.f32 %v591, %v597
        %600 = vst.msk [vmem:[%s215] sm:$0xff] %vm220, %v599
        %s601 = sand.u32 %s137, 1
        %s602 = scalar_lea.sflag [#allocation4], %s601
        %s603 = sand.u32 %s137, 1
        %s604 = smul.addr %s603, 8
        %s605 = scalar_lea.vmem [#allocation3], %s604
        // Predicated region
        $region41: #{tpu_custom_call.1} parent=39 // pred_check
          %p606 = pneg %p147
        $region42: #{tpu_custom_call.1} parent=39 // pred_check_branch
          %608 = sbr.rel (%p606) target = $region44
        $region43: #{tpu_custom_call.1} parent=39 // pred_region
          %s610 = ssub.s32 128, 128
          %611 = vsyncadd %s602, %s610
          %s612 = smul.addr %s19, 128
          %s613 = scalar_lea.hbm %s5, %s612
          %s615 = sshll.u32 %s605, 4
          %s616 = int_to_ptr.vmem [resolvable:$true] %s615
          %618 = dma.vmem_to_hbm [thread:$0]  %s616, 128, %s613, %s602
        $region44: #{tpu_custom_call.1} parent=39 // pred_fallthru
          _
      $region40: #{tpu_custom_call.1} parent=5 // pred_fallthru
        _
      %p619 = scmp.le.s32.totalorder 2, %s14
      // Predicated region
      $region45: #{tpu_custom_call.1} parent=5 // pred_check
        %p620 = pneg %p619
      $region46: #{tpu_custom_call.1} parent=5 // pred_check_branch
        %622 = sbr.rel (%p620) target = $region48
      $region47: #{tpu_custom_call.1} parent=5 // pred_region
        %s623 = ssub.s32 %s14, 2
        // Predicated region
        $region49: #{tpu_custom_call.1} parent=47 // pred_check
          %p624 = pneg %p153
        $region50: #{tpu_custom_call.1} parent=47 // pred_check_branch
          %626 = sbr.rel (%p624) target = $region52
        $region51: #{tpu_custom_call.1} parent=47 // pred_region
          %s627 = sand.u32 %s138, 1
          %s628 = scalar_lea.sflag [#allocation4], %s627
          %s629 = sand.u32 %s138, 1
          %s630 = smul.addr %s629, 8
          %s631 = scalar_lea.vmem [#allocation3], %s630
          %632 = dma.done %s628, 128
        $region52: #{tpu_custom_call.1} parent=47 // pred_fallthru
          _
      $region48: #{tpu_custom_call.1} parent=5 // pred_fallthru
        _
    $region6: #{tpu_custom_call.1} parent=1 // loop_footer
      %s18 = sadd.s32 1, %s14
    $region7: #{tpu_custom_call.1} parent=1 // loop_footer_branch
      %13 = sbr.rel target = $region3
    $region8: #{tpu_custom_call.1} parent=1 // loop_exit
      _
    %633 = vsyncpa [#allocation4], 1
    %s634 = scalar_lea.sflag [#allocation4], 1
    %635 = vsyncpa %s634, 1

</llo_original>
